<compile_context>
chip_gen: v6e
topology: v6e:2x2x1
jax: 0.10.0
libtpu: 0.0.40
codegen_flags: <defaults>
</compile_context>

<pallas_src>
import functools

import jax
import jax.numpy as jnp
from jax.experimental import pallas as pl
from jax.experimental.pallas import tpu as pltpu


# ----------------------------- fused Pallas kernel ---------------------------

def _fused_text_kernel(pT_ref, wc_ref, bc_ref, w1_ref, b1_ref, w2_ref, b2_ref,
                       o_ref, acc_sc, *, chans_per_step, t_valid):
    """One grid step = one chunk of conv channels x one slice of `hidden`.

    Grid = (hidden_splits, C // chans_per_step).
      axis 0 ("parallel"):  splits hidden across TensorCores (v7x megacore);
      axis 1 ("arbitrary"): streams W1 channel-chunks through VMEM while
                            accumulating this core's partial Linear-1 output.
    """
    k = pl.program_id(1)

    @pl.when(k == 0)
    def _():
        acc_sc[...] = jnp.zeros(acc_sc.shape, jnp.float32)

    # -- Conv1d (as matmul) + bias + tanh for just this chunk of channels -----
    pre = jnp.dot(wc_ref[...], pT_ref[...],
                  preferred_element_type=jnp.float32)        # (cb, T_pad) f32
    act = jnp.tanh(pre + bc_ref[...])
    # Zero the padded time positions (tanh(bias) != 0 there) so correctness
    # never depends on W1's zero time-padding staying exactly zero.
    t_idx = jax.lax.broadcasted_iota(jnp.int32, act.shape, 1)
    act = jnp.where(t_idx < t_valid, act, 0.0).astype(w1_ref.dtype)   # bf16

    # -- First Linear, this chunk's contribution: sum_c act[c,:] @ W1[c,:,:] --
    # chans_per_step fat GEMVs (K = T_pad), one pass over the streamed W1 tile,
    # accumulated in registers; a single accumulator write per grid step.
    partial = jnp.zeros(acc_sc.shape, jnp.float32)
    for c in range(chans_per_step):                          # small static unroll
        partial = partial + jnp.dot(act[c:c + 1, :], w1_ref[c],
                                    preferred_element_type=jnp.float32)
    acc_sc[...] += partial

    # -- Last chunk: bias + ReLU + second Linear on this core's hidden slice --
    @pl.when(k == pl.num_programs(1) - 1)
    def _():
        z = jnp.maximum(acc_sc[...] + b1_ref[...], 0.0)      # (1, hidden_slice)
        o_ref[...] = (jnp.dot(z, w2_ref[...],
                              preferred_element_type=jnp.float32)
                      + b2_ref[...])                         # (1, classes_pad)


# ------------------------------ host wrapper ---------------------------------

@functools.partial(
    jax.jit,
    static_argnames=("word_embd_dim", "word_kernel_size", "num_classes",
                     "chans_per_step"))
def text_model_forward(x, prep, *, word_embd_dim, word_kernel_size=2,
                       num_classes, chans_per_step=16):
    """Replicates TextClassification.forward for batch == 1.

    x: (1, 1, L) f32, L = seq_len * word_embd_dim.
    prep: pre-laid-out parameters from prepare_params().
    Returns logits of shape (num_classes,).
    """
    E = word_embd_dim
    Kw = word_kernel_size
    K = Kw * E
    L = x.shape[-1]
    seq_len = L // E
    t1 = seq_len + Kw - 1                       # conv output length

    C, t1_pad, hidden = prep["w1"].shape
    classes_pad = prep["w2"].shape[1]
    hidden_splits = prep["b2x"].shape[1] // classes_pad
    assert C % chans_per_step == 0
    assert hidden % hidden_splits == 0
    h_slice = hidden // hidden_splits
    assert h_slice % 128 == 0
    nk = C // chans_per_step

    # --- im2col via shifted slices + concat (no gather), TRANSPOSED to
    #     (K, t1_pad) so the in-kernel conv directly produces the channel-major
    #     activation layout matching PyTorch's Flatten(start_dim=0). ----------
    xflat = x.reshape(-1)
    xp = jnp.pad(xflat, ((Kw - 1) * E, (Kw - 1) * E))
    parts = [xp[w * E:(w + t1) * E].reshape(t1, E) for w in range(Kw)]
    patches = jnp.concatenate(parts, axis=1)                      # (t1, K)
    patchesT = jnp.zeros((K, t1_pad), jnp.float32).at[:, :t1].set(patches.T)

    kernel = functools.partial(_fused_text_kernel,
                               chans_per_step=chans_per_step, t_valid=t1)

    w1_bytes = int(C * t1_pad * hidden * prep["w1"].dtype.itemsize)
    cost = pl.CostEstimate(
        flops=(2 * C * K * t1_pad * hidden_splits       # conv (recomputed/split)
               + 2 * C * t1_pad * hidden                 # Linear 1
               + 2 * hidden * classes_pad),              # Linear 2
        transcendentals=C * t1_pad * hidden_splits,      # tanh
        bytes_accessed=(w1_bytes
                        + hidden_splits * K * t1_pad * 4
                        + hidden * classes_pad * 4
                        + hidden_splits * classes_pad * 4))

    out = pl.pallas_call(
        kernel,
        out_shape=jax.ShapeDtypeStruct((1, hidden_splits * classes_pad),
                                       jnp.float32),
        grid_spec=pltpu.PrefetchScalarGridSpec(
            num_scalar_prefetch=0,
            grid=(hidden_splits, nk),
            in_specs=[
                pl.BlockSpec((K, t1_pad), lambda i, k: (0, 0)),           # patchesT
                pl.BlockSpec((chans_per_step, K), lambda i, k: (k, 0)),   # conv W
                pl.BlockSpec((chans_per_step, 1), lambda i, k: (k, 0)),   # conv b
                pl.BlockSpec((chans_per_step, t1_pad, h_slice),
                             lambda i, k: (k, 0, i)),                     # W1 tile
                pl.BlockSpec((1, h_slice), lambda i, k: (0, i)),          # b1 slice
                pl.BlockSpec((h_slice, classes_pad), lambda i, k: (i, 0)),# w2 slice
                pl.BlockSpec((1, classes_pad), lambda i, k: (0, i)),      # b2 / 0
            ],
            out_specs=pl.BlockSpec((1, classes_pad), lambda i, k: (0, i)),
            scratch_shapes=[pltpu.VMEM((1, h_slice), jnp.float32)],       # L1 acc
        ),
        compiler_params=pltpu.CompilerParams(
            dimension_semantics=("parallel", "arbitrary")),
        cost_estimate=cost,
    )(patchesT, prep["wc"], prep["bc"], prep["w1"], prep["b1"],
      prep["w2"], prep["b2x"])

    # Sum per-hidden-split partial logits, strip class padding.
    logits_pad = out.reshape(hidden_splits, classes_pad).sum(axis=0)
    return logits_pad[:num_classes]


# --------------------------- parameter preparation ---------------------------

def init_params(key, word_embd_dim, num_classes, seq_len, word_kernel_size=2,
                out_channels=48, hidden=256):
    """Deterministic synthetic parameters in the original PyTorch layouts."""
    E = word_embd_dim
    K = word_kernel_size * E
    t1 = seq_len + word_kernel_size - 1
    in_features = out_channels * t1            # analogue of 63408 at small scale

    ks = jax.random.split(key, 6)

    def u(k, shape, fan_in):
        bound = 1.0 / jnp.sqrt(fan_in)
        return jax.random.uniform(k, shape, jnp.float32, -bound, bound)

    return {
        "wc": u(ks[0], (out_channels, 1, K), K),        # Conv1d weight (O,I,K)
        "bc": u(ks[1], (out_channels,), K),             # Conv1d bias
        "w1": u(ks[2], (hidden, in_features), in_features),
        "b1": u(ks[3], (hidden,), in_features),
        "w2": u(ks[4], (num_classes, hidden), hidden),
        "b2": u(ks[5], (num_classes,), hidden),
    }


def prepare_params(params, *, word_embd_dim, word_kernel_size=2, seq_len,
                   classes_pad=128, t_pad_to=128, hidden_splits=2):
    """One-time (outside the forward) repacking:
       - conv weight -> (C, K) f32, conv bias -> (C, 1) f32
       - W1 -> channel-major (C, t1_pad, hidden), DENSE over the 48 channels,
         zero-padded only along time, cast to bf16 (dominant HBM stream)
       - w2 -> (hidden, classes_pad) f32 lane-dense; b2 placed only in the
         first hidden-split's output row (others add zeros)."""
    E = word_embd_dim
    Kw = word_kernel_size
    t1 = seq_len + Kw - 1
    t1_pad = ((t1 + t_pad_to - 1) // t_pad_to) * t_pad_to

    wc = params["wc"]                                   # (C, 1, K)
    C = wc.shape[0]
    wc_p = wc[:, 0, :].astype(jnp.float32)              # (C, K)
    bc_p = params["bc"].reshape(C, 1).astype(jnp.float32)

    w1 = params["w1"]                                   # (hidden, C * t1)
    hidden = w1.shape[0]
    # PyTorch Flatten(start_dim=0) of (1, C, t1) is channel-major: f = c*t1 + t.
    w1_cth = jnp.transpose(w1.reshape(hidden, C, t1), (1, 2, 0))   # (C, t1, h)
    w1_p = jnp.zeros((C, t1_pad, hidden), jnp.float32).at[:, :t1, :].set(w1_cth)
    w1_p = w1_p.astype(jnp.bfloat16)

    b1_p = params["b1"][None, :].astype(jnp.float32)    # (1, hidden)

    w2 = params["w2"]                                   # (num_classes, hidden)
    nc = w2.shape[0]
    w2_p = jnp.zeros((hidden, classes_pad), jnp.float32).at[:, :nc].set(w2.T)
    # b2 only in split 0's slot; remaining splits contribute zero bias.
    b2x = jnp.zeros((1, hidden_splits * classes_pad),
                    jnp.float32).at[0, :nc].set(params["b2"])

    return {"wc": wc_p, "bc": bc_p, "w1": w1_p, "b1": b1_p,
            "w2": w2_p, "b2x": b2x}


# ------------------------------ reference ------------------------------------

def _reference_forward(x, params, word_embd_dim, word_kernel_size=2):
    """Pure-JAX reference (lax conv + dense), emulating the kernel's bf16
    storage of W1 / bf16 MXU inputs for the first Linear."""
    E = word_embd_dim
    pad = (word_kernel_size - 1) * E
    conv = jax.lax.conv_general_dilated(
        x, params["wc"], window_strides=(E,), padding=[(pad, pad)],
        dimension_numbers=("NCH", "OIH", "NCH"))        # (1, out_ch, T1)
    h = jnp.tanh(conv + params["bc"][None, :, None])
    flat = h.reshape(-1)                                # Flatten(start_dim=0)
    w1_bf = params["w1"].astype(jnp.bfloat16).astype(jnp.float32)
    flat_bf = flat.astype(jnp.bfloat16).astype(jnp.float32)
    z1 = jnp.maximum(flat_bf @ w1_bf.T + params["b1"], 0.0)
    return z1 @ params["w2"].T + params["b2"]


# --------------------------------- main ---------------------------------------

if __name__ == "__main__":
    word_embd_dim = 8
    word_kernel_size = 2
    seq_len = 8
    decoder = ["alpha", "beta", "gamma", "delta", "epsilon"]
    num_classes = len(decoder)

    key = jax.random.PRNGKey(0)
    k_x, k_p = jax.random.split(key)

    L = seq_len * word_embd_dim
    x = jax.random.normal(k_x, (1, 1, L), dtype=jnp.float32)   # NCL, batch = 1

    params = init_params(k_p, word_embd_dim, num_classes, seq_len,
                         word_kernel_size=word_kernel_size)
    prep = prepare_params(params, word_embd_dim=word_embd_dim,
                          word_kernel_size=word_kernel_size, seq_len=seq_len)

    logits = text_model_forward(x, prep, word_embd_dim=word_embd_dim,
                                word_kernel_size=word_kernel_size,
                                num_classes=num_classes)
    jax.block_until_ready(logits)

    ref = _reference_forward(x, params, word_embd_dim, word_kernel_size)
    assert logits.shape == (num_classes,)
    assert jnp.allclose(logits, ref, atol=2e-3, rtol=2e-3), (logits, ref)

    print("KERNEL_OK")
</pallas_src>

<mosaic_0001>
module attributes {stable_mosaic.version = 11 : i64} {
  func.func @_fused_text_kernel(%arg0: i32, %arg1: i32, %arg2: memref<16x128xf32, #tpu.memory_space<vmem>>, %arg3: memref<16x16xf32, #tpu.memory_space<vmem>>, %arg4: memref<16x1xf32, #tpu.memory_space<vmem>>, %arg5: memref<16x128x128xbf16, #tpu.memory_space<vmem>>, %arg6: memref<1x128xf32, #tpu.memory_space<vmem>>, %arg7: memref<128x128xf32, #tpu.memory_space<vmem>>, %arg8: memref<1x128xf32, #tpu.memory_space<vmem>>, %arg9: memref<1x128xf32, #tpu.memory_space<vmem>>, %arg10: memref<1x128xf32, #tpu.memory_space<vmem>>) attributes {dimension_semantics = [#tpu.dimension_semantics<parallel>, #tpu.dimension_semantics<arbitrary>], iteration_bounds = array<i64: 2, 3>, scalar_prefetch = 0 : i64, scratch_operands = 1 : i64, tpu.core_type = #tpu.core_type<tc>, window_params = [{pipeline_mode = #tpu.pipeline_mode<synchronous>, transform_indices = @transform_0, window_bounds = array<i64: 16, 128>}, {transform_indices = @transform_1, window_bounds = array<i64: 16, 16>}, {transform_indices = @transform_2, window_bounds = array<i64: 16, 1>}, {transform_indices = @transform_3, window_bounds = array<i64: 16, 128, 128>}, {transform_indices = @transform_4, window_bounds = array<i64: 1, 128>}, {transform_indices = @transform_5, window_bounds = array<i64: 128, 128>}, {transform_indices = @transform_6, window_bounds = array<i64: 1, 128>}, {transform_indices = @transform_7, window_bounds = array<i64: 1, 128>}]} {
    %c0_i32 = arith.constant 0 : i32
    %0 = arith.cmpi eq, %arg1, %c0_i32 : i32
    %1 = arith.extui %0 : i1 to i32
    %c0_i32_0 = arith.constant 0 : i32
    %2 = arith.cmpi ne, %1, %c0_i32_0 : i32
    scf.if %2 {
      %cst_62 = arith.constant 0.000000e+00 : f32
      %103 = vector.broadcast %cst_62 : f32 to vector<1x128xf32>
      %c0_63 = arith.constant 0 : index
      %c0_64 = arith.constant 0 : index
      %104 = vector.load %arg10[%c0_63, %c0_64] : memref<1x128xf32, #tpu.memory_space<vmem>>, vector<1x128xf32>
      tpu.vector_store %arg10[%c0_63, %c0_64], %103 {strides = array<i32>} : memref<1x128xf32, #tpu.memory_space<vmem>>, vector<1x128xf32>,
    } else {
    }
    %c0 = arith.constant 0 : index
    %c0_1 = arith.constant 0 : index
    %3 = vector.load %arg3[%c0, %c0_1] : memref<16x16xf32, #tpu.memory_space<vmem>>, vector<16x16xf32>
    %c0_2 = arith.constant 0 : index
    %c0_3 = arith.constant 0 : index
    %4 = vector.load %arg2[%c0_2, %c0_3] : memref<16x128xf32, #tpu.memory_space<vmem>>, vector<16x128xf32>
    %cst = arith.constant dense<0.000000e+00> : vector<16x128xf32>
    %5 = tpu.matmul %3, %4, %cst {dimension_numbers = #tpu.dot_dimension_numbers<[1], [0], [0], [1], [0, 0, 1, 1], [], []>} : vector<16x16xf32>, vector<16x128xf32>, vector<16x128xf32> -> vector<16x128xf32>
    %c0_4 = arith.constant 0 : index
    %c0_5 = arith.constant 0 : index
    %6 = vector.load %arg4[%c0_4, %c0_5] : memref<16x1xf32, #tpu.memory_space<vmem>>, vector<16x1xf32>
    %7 = vector.broadcast %6 : vector<16x1xf32> to vector<16x128xf32>
    %8 = arith.addf %5, %7 : vector<16x128xf32>
    %9 = math.tanh %8 : vector<16x128xf32>
    %10 = tpu.iota {dimensions = array<i32: 1>} : vector<16x128xi32>
    %c9_i32 = arith.constant 9 : i32
    %11 = vector.broadcast %c9_i32 : i32 to vector<16x128xi32>
    %12 = arith.cmpi slt, %10, %11 : vector<16x128xi32>
    %cst_6 = arith.constant 0.000000e+00 : f32
    %13 = vector.broadcast %cst_6 : f32 to vector<16x128xf32>
    %14 = arith.select %12, %9, %13 : vector<16x128xi1>, vector<16x128xf32>
    %15 = arith.truncf %14 : vector<16x128xf32> to vector<16x128xbf16>
    %cst_7 = arith.constant 0.000000e+00 : f32
    %16 = vector.broadcast %cst_7 : f32 to vector<1x128xf32>
    %17 = vector.extract_strided_slice %15 {offsets = [0, 0], sizes = [1, 128], strides = [1, 1]} : vector<16x128xbf16> to vector<1x128xbf16>
    %c0_8 = arith.constant 0 : index
    %c0_9 = arith.constant 0 : index
    %c0_10 = arith.constant 0 : index
    %18 = vector.load %arg5[%c0_8, %c0_9, %c0_10] : memref<16x128x128xbf16, #tpu.memory_space<vmem>>, vector<1x128x128xbf16>
    %19 = vector.shape_cast %18 : vector<1x128x128xbf16> to vector<128x128xbf16>
    %cst_11 = arith.constant dense<0.000000e+00> : vector<1x128xf32>
    %20 = tpu.matmul %17, %19, %cst_11 {dimension_numbers = #tpu.dot_dimension_numbers<[1], [0], [0], [1], [0, 0, 1, 1], [], []>} : vector<1x128xbf16>, vector<128x128xbf16>, vector<1x128xf32> -> vector<1x128xf32>
    %21 = arith.addf %16, %20 : vector<1x128xf32>
    %22 = vector.extract_strided_slice %15 {offsets = [1, 0], sizes = [1, 128], strides = [1, 1]} : vector<16x128xbf16> to vector<1x128xbf16>
    %c1 = arith.constant 1 : index
    %c0_12 = arith.constant 0 : index
    %c0_13 = arith.constant 0 : index
    %23 = vector.load %arg5[%c1, %c0_12, %c0_13] : memref<16x128x128xbf16, #tpu.memory_space<vmem>>, vector<1x128x128xbf16>
    %24 = vector.shape_cast %23 : vector<1x128x128xbf16> to vector<128x128xbf16>
    %cst_14 = arith.constant dense<0.000000e+00> : vector<1x128xf32>
    %25 = tpu.matmul %22, %24, %cst_14 {dimension_numbers = #tpu.dot_dimension_numbers<[1], [0], [0], [1], [0, 0, 1, 1], [], []>} : vector<1x128xbf16>, vector<128x128xbf16>, vector<1x128xf32> -> vector<1x128xf32>
    %26 = arith.addf %21, %25 : vector<1x128xf32>
    %27 = vector.extract_strided_slice %15 {offsets = [2, 0], sizes = [1, 128], strides = [1, 1]} : vector<16x128xbf16> to vector<1x128xbf16>
    %c2 = arith.constant 2 : index
    %c0_15 = arith.constant 0 : index
    %c0_16 = arith.constant 0 : index
    %28 = vector.load %arg5[%c2, %c0_15, %c0_16] : memref<16x128x128xbf16, #tpu.memory_space<vmem>>, vector<1x128x128xbf16>
    %29 = vector.shape_cast %28 : vector<1x128x128xbf16> to vector<128x128xbf16>
    %cst_17 = arith.constant dense<0.000000e+00> : vector<1x128xf32>
    %30 = tpu.matmul %27, %29, %cst_17 {dimension_numbers = #tpu.dot_dimension_numbers<[1], [0], [0], [1], [0, 0, 1, 1], [], []>} : vector<1x128xbf16>, vector<128x128xbf16>, vector<1x128xf32> -> vector<1x128xf32>
    %31 = arith.addf %26, %30 : vector<1x128xf32>
    %32 = vector.extract_strided_slice %15 {offsets = [3, 0], sizes = [1, 128], strides = [1, 1]} : vector<16x128xbf16> to vector<1x128xbf16>
    %c3 = arith.constant 3 : index
    %c0_18 = arith.constant 0 : index
    %c0_19 = arith.constant 0 : index
    %33 = vector.load %arg5[%c3, %c0_18, %c0_19] : memref<16x128x128xbf16, #tpu.memory_space<vmem>>, vector<1x128x128xbf16>
    %34 = vector.shape_cast %33 : vector<1x128x128xbf16> to vector<128x128xbf16>
    %cst_20 = arith.constant dense<0.000000e+00> : vector<1x128xf32>
    %35 = tpu.matmul %32, %34, %cst_20 {dimension_numbers = #tpu.dot_dimension_numbers<[1], [0], [0], [1], [0, 0, 1, 1], [], []>} : vector<1x128xbf16>, vector<128x128xbf16>, vector<1x128xf32> -> vector<1x128xf32>
    %36 = arith.addf %31, %35 : vector<1x128xf32>
    %37 = vector.extract_strided_slice %15 {offsets = [4, 0], sizes = [1, 128], strides = [1, 1]} : vector<16x128xbf16> to vector<1x128xbf16>
    %c4 = arith.constant 4 : index
    %c0_21 = arith.constant 0 : index
    %c0_22 = arith.constant 0 : index
    %38 = vector.load %arg5[%c4, %c0_21, %c0_22] : memref<16x128x128xbf16, #tpu.memory_space<vmem>>, vector<1x128x128xbf16>
    %39 = vector.shape_cast %38 : vector<1x128x128xbf16> to vector<128x128xbf16>
    %cst_23 = arith.constant dense<0.000000e+00> : vector<1x128xf32>
    %40 = tpu.matmul %37, %39, %cst_23 {dimension_numbers = #tpu.dot_dimension_numbers<[1], [0], [0], [1], [0, 0, 1, 1], [], []>} : vector<1x128xbf16>, vector<128x128xbf16>, vector<1x128xf32> -> vector<1x128xf32>
    %41 = arith.addf %36, %40 : vector<1x128xf32>
    %42 = vector.extract_strided_slice %15 {offsets = [5, 0], sizes = [1, 128], strides = [1, 1]} : vector<16x128xbf16> to vector<1x128xbf16>
    %c5 = arith.constant 5 : index
    %c0_24 = arith.constant 0 : index
    %c0_25 = arith.constant 0 : index
    %43 = vector.load %arg5[%c5, %c0_24, %c0_25] : memref<16x128x128xbf16, #tpu.memory_space<vmem>>, vector<1x128x128xbf16>
    %44 = vector.shape_cast %43 : vector<1x128x128xbf16> to vector<128x128xbf16>
    %cst_26 = arith.constant dense<0.000000e+00> : vector<1x128xf32>
    %45 = tpu.matmul %42, %44, %cst_26 {dimension_numbers = #tpu.dot_dimension_numbers<[1], [0], [0], [1], [0, 0, 1, 1], [], []>} : vector<1x128xbf16>, vector<128x128xbf16>, vector<1x128xf32> -> vector<1x128xf32>
    %46 = arith.addf %41, %45 : vector<1x128xf32>
    %47 = vector.extract_strided_slice %15 {offsets = [6, 0], sizes = [1, 128], strides = [1, 1]} : vector<16x128xbf16> to vector<1x128xbf16>
    %c6 = arith.constant 6 : index
    %c0_27 = arith.constant 0 : index
    %c0_28 = arith.constant 0 : index
    %48 = vector.load %arg5[%c6, %c0_27, %c0_28] : memref<16x128x128xbf16, #tpu.memory_space<vmem>>, vector<1x128x128xbf16>
    %49 = vector.shape_cast %48 : vector<1x128x128xbf16> to vector<128x128xbf16>
    %cst_29 = arith.constant dense<0.000000e+00> : vector<1x128xf32>
    %50 = tpu.matmul %47, %49, %cst_29 {dimension_numbers = #tpu.dot_dimension_numbers<[1], [0], [0], [1], [0, 0, 1, 1], [], []>} : vector<1x128xbf16>, vector<128x128xbf16>, vector<1x128xf32> -> vector<1x128xf32>
    %51 = arith.addf %46, %50 : vector<1x128xf32>
    %52 = vector.extract_strided_slice %15 {offsets = [7, 0], sizes = [1, 128], strides = [1, 1]} : vector<16x128xbf16> to vector<1x128xbf16>
    %c7 = arith.constant 7 : index
    %c0_30 = arith.constant 0 : index
    %c0_31 = arith.constant 0 : index
    %53 = vector.load %arg5[%c7, %c0_30, %c0_31] : memref<16x128x128xbf16, #tpu.memory_space<vmem>>, vector<1x128x128xbf16>
    %54 = vector.shape_cast %53 : vector<1x128x128xbf16> to vector<128x128xbf16>
    %cst_32 = arith.constant dense<0.000000e+00> : vector<1x128xf32>
    %55 = tpu.matmul %52, %54, %cst_32 {dimension_numbers = #tpu.dot_dimension_numbers<[1], [0], [0], [1], [0, 0, 1, 1], [], []>} : vector<1x128xbf16>, vector<128x128xbf16>, vector<1x128xf32> -> vector<1x128xf32>
    %56 = arith.addf %51, %55 : vector<1x128xf32>
    %57 = vector.extract_strided_slice %15 {offsets = [8, 0], sizes = [1, 128], strides = [1, 1]} : vector<16x128xbf16> to vector<1x128xbf16>
    %c8 = arith.constant 8 : index
    %c0_33 = arith.constant 0 : index
    %c0_34 = arith.constant 0 : index
    %58 = vector.load %arg5[%c8, %c0_33, %c0_34] : memref<16x128x128xbf16, #tpu.memory_space<vmem>>, vector<1x128x128xbf16>
    %59 = vector.shape_cast %58 : vector<1x128x128xbf16> to vector<128x128xbf16>
    %cst_35 = arith.constant dense<0.000000e+00> : vector<1x128xf32>
    %60 = tpu.matmul %57, %59, %cst_35 {dimension_numbers = #tpu.dot_dimension_numbers<[1], [0], [0], [1], [0, 0, 1, 1], [], []>} : vector<1x128xbf16>, vector<128x128xbf16>, vector<1x128xf32> -> vector<1x128xf32>
    %61 = arith.addf %56, %60 : vector<1x128xf32>
    %62 = vector.extract_strided_slice %15 {offsets = [9, 0], sizes = [1, 128], strides = [1, 1]} : vector<16x128xbf16> to vector<1x128xbf16>
    %c9 = arith.constant 9 : index
    %c0_36 = arith.constant 0 : index
    %c0_37 = arith.constant 0 : index
    %63 = vector.load %arg5[%c9, %c0_36, %c0_37] : memref<16x128x128xbf16, #tpu.memory_space<vmem>>, vector<1x128x128xbf16>
    %64 = vector.shape_cast %63 : vector<1x128x128xbf16> to vector<128x128xbf16>
    %cst_38 = arith.constant dense<0.000000e+00> : vector<1x128xf32>
    %65 = tpu.matmul %62, %64, %cst_38 {dimension_numbers = #tpu.dot_dimension_numbers<[1], [0], [0], [1], [0, 0, 1, 1], [], []>} : vector<1x128xbf16>, vector<128x128xbf16>, vector<1x128xf32> -> vector<1x128xf32>
    %66 = arith.addf %61, %65 : vector<1x128xf32>
    %67 = vector.extract_strided_slice %15 {offsets = [10, 0], sizes = [1, 128], strides = [1, 1]} : vector<16x128xbf16> to vector<1x128xbf16>
    %c10 = arith.constant 10 : index
    %c0_39 = arith.constant 0 : index
    %c0_40 = arith.constant 0 : index
    %68 = vector.load %arg5[%c10, %c0_39, %c0_40] : memref<16x128x128xbf16, #tpu.memory_space<vmem>>, vector<1x128x128xbf16>
    %69 = vector.shape_cast %68 : vector<1x128x128xbf16> to vector<128x128xbf16>
    %cst_41 = arith.constant dense<0.000000e+00> : vector<1x128xf32>
    %70 = tpu.matmul %67, %69, %cst_41 {dimension_numbers = #tpu.dot_dimension_numbers<[1], [0], [0], [1], [0, 0, 1, 1], [], []>} : vector<1x128xbf16>, vector<128x128xbf16>, vector<1x128xf32> -> vector<1x128xf32>
    %71 = arith.addf %66, %70 : vector<1x128xf32>
    %72 = vector.extract_strided_slice %15 {offsets = [11, 0], sizes = [1, 128], strides = [1, 1]} : vector<16x128xbf16> to vector<1x128xbf16>
    %c11 = arith.constant 11 : index
    %c0_42 = arith.constant 0 : index
    %c0_43 = arith.constant 0 : index
    %73 = vector.load %arg5[%c11, %c0_42, %c0_43] : memref<16x128x128xbf16, #tpu.memory_space<vmem>>, vector<1x128x128xbf16>
    %74 = vector.shape_cast %73 : vector<1x128x128xbf16> to vector<128x128xbf16>
    %cst_44 = arith.constant dense<0.000000e+00> : vector<1x128xf32>
    %75 = tpu.matmul %72, %74, %cst_44 {dimension_numbers = #tpu.dot_dimension_numbers<[1], [0], [0], [1], [0, 0, 1, 1], [], []>} : vector<1x128xbf16>, vector<128x128xbf16>, vector<1x128xf32> -> vector<1x128xf32>
    %76 = arith.addf %71, %75 : vector<1x128xf32>
    %77 = vector.extract_strided_slice %15 {offsets = [12, 0], sizes = [1, 128], strides = [1, 1]} : vector<16x128xbf16> to vector<1x128xbf16>
    %c12 = arith.constant 12 : index
    %c0_45 = arith.constant 0 : index
    %c0_46 = arith.constant 0 : index
    %78 = vector.load %arg5[%c12, %c0_45, %c0_46] : memref<16x128x128xbf16, #tpu.memory_space<vmem>>, vector<1x128x128xbf16>
    %79 = vector.shape_cast %78 : vector<1x128x128xbf16> to vector<128x128xbf16>
    %cst_47 = arith.constant dense<0.000000e+00> : vector<1x128xf32>
    %80 = tpu.matmul %77, %79, %cst_47 {dimension_numbers = #tpu.dot_dimension_numbers<[1], [0], [0], [1], [0, 0, 1, 1], [], []>} : vector<1x128xbf16>, vector<128x128xbf16>, vector<1x128xf32> -> vector<1x128xf32>
    %81 = arith.addf %76, %80 : vector<1x128xf32>
    %82 = vector.extract_strided_slice %15 {offsets = [13, 0], sizes = [1, 128], strides = [1, 1]} : vector<16x128xbf16> to vector<1x128xbf16>
    %c13 = arith.constant 13 : index
    %c0_48 = arith.constant 0 : index
    %c0_49 = arith.constant 0 : index
    %83 = vector.load %arg5[%c13, %c0_48, %c0_49] : memref<16x128x128xbf16, #tpu.memory_space<vmem>>, vector<1x128x128xbf16>
    %84 = vector.shape_cast %83 : vector<1x128x128xbf16> to vector<128x128xbf16>
    %cst_50 = arith.constant dense<0.000000e+00> : vector<1x128xf32>
    %85 = tpu.matmul %82, %84, %cst_50 {dimension_numbers = #tpu.dot_dimension_numbers<[1], [0], [0], [1], [0, 0, 1, 1], [], []>} : vector<1x128xbf16>, vector<128x128xbf16>, vector<1x128xf32> -> vector<1x128xf32>
    %86 = arith.addf %81, %85 : vector<1x128xf32>
    %87 = vector.extract_strided_slice %15 {offsets = [14, 0], sizes = [1, 128], strides = [1, 1]} : vector<16x128xbf16> to vector<1x128xbf16>
    %c14 = arith.constant 14 : index
    %c0_51 = arith.constant 0 : index
    %c0_52 = arith.constant 0 : index
    %88 = vector.load %arg5[%c14, %c0_51, %c0_52] : memref<16x128x128xbf16, #tpu.memory_space<vmem>>, vector<1x128x128xbf16>
    %89 = vector.shape_cast %88 : vector<1x128x128xbf16> to vector<128x128xbf16>
    %cst_53 = arith.constant dense<0.000000e+00> : vector<1x128xf32>
    %90 = tpu.matmul %87, %89, %cst_53 {dimension_numbers = #tpu.dot_dimension_numbers<[1], [0], [0], [1], [0, 0, 1, 1], [], []>} : vector<1x128xbf16>, vector<128x128xbf16>, vector<1x128xf32> -> vector<1x128xf32>
    %91 = arith.addf %86, %90 : vector<1x128xf32>
    %92 = vector.extract_strided_slice %15 {offsets = [15, 0], sizes = [1, 128], strides = [1, 1]} : vector<16x128xbf16> to vector<1x128xbf16>
    %c15 = arith.constant 15 : index
    %c0_54 = arith.constant 0 : index
    %c0_55 = arith.constant 0 : index
    %93 = vector.load %arg5[%c15, %c0_54, %c0_55] : memref<16x128x128xbf16, #tpu.memory_space<vmem>>, vector<1x128x128xbf16>
    %94 = vector.shape_cast %93 : vector<1x128x128xbf16> to vector<128x128xbf16>
    %cst_56 = arith.constant dense<0.000000e+00> : vector<1x128xf32>
    %95 = tpu.matmul %92, %94, %cst_56 {dimension_numbers = #tpu.dot_dimension_numbers<[1], [0], [0], [1], [0, 0, 1, 1], [], []>} : vector<1x128xbf16>, vector<128x128xbf16>, vector<1x128xf32> -> vector<1x128xf32>
    %96 = arith.addf %91, %95 : vector<1x128xf32>
    %c0_57 = arith.constant 0 : index
    %c0_58 = arith.constant 0 : index
    %97 = vector.load %arg10[%c0_57, %c0_58] : memref<1x128xf32, #tpu.memory_space<vmem>>, vector<1x128xf32>
    %98 = arith.addf %97, %96 : vector<1x128xf32>
    %c0_59 = arith.constant 0 : index
    %c0_60 = arith.constant 0 : index
    %99 = vector.load %arg10[%c0_59, %c0_60] : memref<1x128xf32, #tpu.memory_space<vmem>>, vector<1x128xf32>
    tpu.vector_store %arg10[%c0_59, %c0_60], %98 {strides = array<i32>} : memref<1x128xf32, #tpu.memory_space<vmem>>, vector<1x128xf32>,
    %c2_i32 = arith.constant 2 : i32
    %100 = arith.cmpi eq, %arg1, %c2_i32 : i32
    %101 = arith.extui %100 : i1 to i32
    %c0_i32_61 = arith.constant 0 : i32
    %102 = arith.cmpi ne, %101, %c0_i32_61 : i32
    scf.if %102 {
      %c0_62 = arith.constant 0 : index
      %c0_63 = arith.constant 0 : index
      %103 = vector.load %arg10[%c0_62, %c0_63] : memref<1x128xf32, #tpu.memory_space<vmem>>, vector<1x128xf32>
      %c0_64 = arith.constant 0 : index
      %c0_65 = arith.constant 0 : index
      %104 = vector.load %arg6[%c0_64, %c0_65] : memref<1x128xf32, #tpu.memory_space<vmem>>, vector<1x128xf32>
      %105 = arith.addf %103, %104 : vector<1x128xf32>
      %cst_66 = arith.constant 0.000000e+00 : f32
      %106 = vector.broadcast %cst_66 : f32 to vector<1x128xf32>
      %107 = arith.maximumf %105, %106 : vector<1x128xf32>
      %c0_67 = arith.constant 0 : index
      %c0_68 = arith.constant 0 : index
      %108 = vector.load %arg7[%c0_67, %c0_68] : memref<128x128xf32, #tpu.memory_space<vmem>>, vector<128x128xf32>
      %cst_69 = arith.constant dense<0.000000e+00> : vector<1x128xf32>
      %109 = tpu.matmul %107, %108, %cst_69 {dimension_numbers = #tpu.dot_dimension_numbers<[1], [0], [0], [1], [0, 0, 1, 1], [], []>} : vector<1x128xf32>, vector<128x128xf32>, vector<1x128xf32> -> vector<1x128xf32>
      %c0_70 = arith.constant 0 : index
      %c0_71 = arith.constant 0 : index
      %110 = vector.load %arg8[%c0_70, %c0_71] : memref<1x128xf32, #tpu.memory_space<vmem>>, vector<1x128xf32>
      %111 = arith.addf %109, %110 : vector<1x128xf32>
      %c0_72 = arith.constant 0 : index
      %c0_73 = arith.constant 0 : index
      %112 = vector.load %arg9[%c0_72, %c0_73] : memref<1x128xf32, #tpu.memory_space<vmem>>, vector<1x128xf32>
      tpu.vector_store %arg9[%c0_72, %c0_73], %111 {strides = array<i32>} : memref<1x128xf32, #tpu.memory_space<vmem>>, vector<1x128xf32>,
    } else {
    }
    return
  }
  func.func @transform_0(%arg0: i32, %arg1: i32) -> (i32, i32) {
    %c0_i32 = arith.constant 0 : i32
    %c0_i32_0 = arith.constant 0 : i32
    %c0_i32_1 = arith.constant 0 : i32
    return %c0_i32, %c0_i32_0 : i32, i32
  }
  func.func @transform_1(%arg0: i32, %arg1: i32) -> (i32, i32) {
    %c0_i32 = arith.constant 0 : i32
    %c0_i32_0 = arith.constant 0 : i32
    return %arg1, %c0_i32 : i32, i32
  }
  func.func @transform_2(%arg0: i32, %arg1: i32) -> (i32, i32) {
    %c0_i32 = arith.constant 0 : i32
    %c0_i32_0 = arith.constant 0 : i32
    return %arg1, %c0_i32 : i32, i32
  }
  func.func @transform_3(%arg0: i32, %arg1: i32) -> (i32, i32, i32) {
    %c0_i32 = arith.constant 0 : i32
    %c0_i32_0 = arith.constant 0 : i32
    return %arg1, %c0_i32, %arg0 : i32, i32, i32
  }
  func.func @transform_4(%arg0: i32, %arg1: i32) -> (i32, i32) {
    %c0_i32 = arith.constant 0 : i32
    %c0_i32_0 = arith.constant 0 : i32
    return %c0_i32, %arg0 : i32, i32
  }
  func.func @transform_5(%arg0: i32, %arg1: i32) -> (i32, i32) {
    %c0_i32 = arith.constant 0 : i32
    %c0_i32_0 = arith.constant 0 : i32
    return %arg0, %c0_i32 : i32, i32
  }
  func.func @transform_6(%arg0: i32, %arg1: i32) -> (i32, i32) {
    %c0_i32 = arith.constant 0 : i32
    %c0_i32_0 = arith.constant 0 : i32
    return %c0_i32, %arg0 : i32, i32
  }
  func.func @transform_7(%arg0: i32, %arg1: i32) -> (i32, i32) {
    %c0_i32 = arith.constant 0 : i32
    %c0_i32_0 = arith.constant 0 : i32
    return %c0_i32, %arg0 : i32, i32
  }
}

</mosaic_0001>

<llo_original>
// kernel: text_model_forward.1
$region0: #{text_model_forward.1}
  #allocation0 [shape = 'u32[]', space=smem, size = 0x4, offset = 0x4, fixed_abs, tag = 'smem constant byte address 0x4 - core index']
  #allocation1 [shape = 'u32[144,128]{1,0:T(1,128)}', space=vmem, size = 0x12000, scoped, tag = 'internal scratch']
  #allocation2 [shape = 'f32[1,128]{1,0:T(1,128)}', space=vmem, size = 0x200, scoped, tag = 'scratch operand']
  %s0 = inlined_call_operand.vmem [shape: f32[16,128], index: 0, kind: input, shape index: {}]
  %s1 = inlined_call_operand.vmem [shape: f32[48,16], index: 1, kind: input, shape index: {}]
  %s2 = inlined_call_operand.vmem [shape: f32[48,1], index: 2, kind: input, shape index: {}]
  %s3 = inlined_call_operand.hbm [shape: bf16[48,128,256], index: 3, kind: input, shape index: {}]
  %s4 = inlined_call_operand.hbm [shape: f32[1,256], index: 4, kind: input, shape index: {}]
  %s5 = inlined_call_operand.hbm [shape: f32[256,128], index: 5, kind: input, shape index: {}]
  %s6 = inlined_call_operand.hbm [shape: f32[1,256], index: 6, kind: input, shape index: {}]
  %s7 = inlined_call_operand.vmem [shape: f32[1,256], index: 7, kind: output, shape index: {}]
  %s8 = sld [smem:[#allocation0]]
  $region85: #{text_model_forward.1} parent=0
    _
  %s10 = ssub.s32 1, %s8
  %s11 = scalar_select 0, %s10, %s8
  $region1: #{text_model_forward.1} parent=0
    #allocation3 [shape = 'u8[1048576]{0}', space=vmem, size = 0x100000, scoped, tag = 'input window, operand 3']
    #allocation4 [shape = 's32[2]{0}', space=sflag, size = 0x8, scoped, tag = 'scoped memory for text_model_forward.1']
    #allocation5 [shape = 'u8[1024]{0}', space=vmem, size = 0x400, scoped, tag = 'input window, operand 4']
    #allocation6 [shape = 's32[2]{0}', space=sflag, size = 0x8, scoped, tag = 'scoped memory for text_model_forward.1']
    #allocation7 [shape = 'u8[131072]{0}', space=vmem, size = 0x20000, scoped, tag = 'input window, operand 5']
    #allocation8 [shape = 'u8[1024]{0}', space=vmem, size = 0x400, scoped, tag = 'input window, operand 6']
    #allocation9 [shape = 's32[2]{0}', space=sflag, size = 0x8, scoped, tag = 'scoped memory for text_model_forward.1']
    %12 = vsyncpa [#allocation4], 0
    %s13 = scalar_lea.sflag [#allocation4], 1
    %14 = vsyncpa %s13, 0
    %15 = vsyncpa [#allocation6], 0
    %s16 = scalar_lea.sflag [#allocation6], 1
    %17 = vsyncpa %s16, 0
    %18 = vsyncpa [#allocation9], 0
    %s19 = scalar_lea.sflag [#allocation9], 1
    %20 = vsyncpa %s19, 0
    loop: start=0, step=1, limit=8
    $region2: #{text_model_forward.1} parent=1 // loop_pre_header
      _
    $region3: #{text_model_forward.1} parent=1 // loop_header
      %s22 = sphi 0, %s26
      %p23 = scmp.ge.s32.totalorder %s22, 8
      %s29 = sphi 0, %s41
      %s30 = sphi 0, %s37
      %s31 = sphi 0, %s29
      %s32 = sphi 0, %s30
      %s33 = sphi 0, %s31
      %s34 = sphi 0, %s32
      %s42 = sphi 0, %s42
      %s44 = sphi 0, %s42
      %s45 = sphi 0, %s44
      %s59 = sphi 0, %s45
      %s65 = sphi 0, %s67
      %s68 = sphi 0, %s65
      %s69 = sphi 0, %s68
      %s85 = sphi 0, %s69
      %s91 = sphi 0, %s93
      %s94 = sphi 0, %s91
      %s95 = sphi 0, %s94
      %s111 = sphi 0, %s95
      %s119 = sphi 0, %s121
      %s122 = sphi 0, %s119
      %s123 = sphi 0, %s122
      %s139 = sphi 0, %s123
      %s145 = sphi 0, %s147
      %s148 = sphi 0, %s145
      %s149 = sphi 0, %s148
      %s165 = sphi 0, %s149
      %s171 = sphi 0, %s173
      %s174 = sphi 0, %s171
      %s175 = sphi 0, %s174
      %s191 = sphi 0, %s175
      %s197 = sphi 0, %s199
      %s200 = sphi 0, %s197
      %s201 = sphi 0, %s200
      %s217 = sphi 0, %s201
      %s223 = sphi 0, %s225
      %s226 = sphi 0, %s223
      %s227 = sphi 0, %s226
      %s243 = sphi 0, %s227
    $region4: #{text_model_forward.1} parent=1 // loop_header_branch
      %25 = sbr.rel (%p23) target = $region8
    $region5: #{text_model_forward.1} parent=1 // loop_body
      %s27 = ssub.s32 %s22, 1
      %s28 = ssub.s32 %s22, 2
      %s35 = sadd.s32 1, %s30
      %p36 = scmp.ge.s32.totalorder %s35, 3
      %s37 = scalar_select %p36, 0, %s35
      %s38 = sadd.s32 1, %s29
      %s39 = scalar_select %p36, %s38, %s29
      %p40 = scmp.ge.s32.totalorder %s39, 2
      %s41 = scalar_select %p40, 0, %s39
      %s43 = sadd.s32 %s42, 1
      %p46 = scmp.eq.s32.totalorder %s22, 5
      %p47 = scmp.ne.s32.totalorder %s42, %s44
      %p48 = scmp.eq.s32.totalorder %s22, 0
      %p49 = por %p47, %p48
      %p50 = scmp.ne.s32.totalorder %s42, %s44
      %p51 = scmp.eq.s32.totalorder %s27, 5
      %p52 = por %p50, %p51
      %p53 = scmp.ne.s32.totalorder %s44, %s45
      %p54 = scmp.eq.s32.totalorder %s27, 0
      %p55 = por %p53, %p54
      %p56 = scmp.ne.s32.totalorder %s44, %s45
      %p57 = scmp.eq.s32.totalorder %s28, 5
      %p58 = por %p56, %p57
      %p60 = scmp.ne.s32.totalorder %s45, %s59
      %p61 = scmp.eq.s32.totalorder %s28, 0
      %p62 = por %p60, %p61
      %s63 = ssub.s32 %s30, %s37
      %p64 = scmp.eq.s32.totalorder %s63, 0
      %s66 = sadd.s32 %s65, 1
      %s67 = scalar_select %p64, %s65, %s66
      %p70 = pneg %p64
      %p71 = scmp.eq.s32.totalorder %s22, 5
      %p72 = por %p70, %p71
      %p73 = scmp.ne.s32.totalorder %s65, %s68
      %p74 = scmp.eq.s32.totalorder %s22, 0
      %p75 = por %p73, %p74
      %p76 = scmp.ne.s32.totalorder %s65, %s68
      %p77 = scmp.eq.s32.totalorder %s27, 5
      %p78 = por %p76, %p77
      %p79 = scmp.ne.s32.totalorder %s68, %s69
      %p80 = scmp.eq.s32.totalorder %s27, 0
      %p81 = por %p79, %p80
      %p82 = scmp.ne.s32.totalorder %s68, %s69
      %p83 = scmp.eq.s32.totalorder %s28, 5
      %p84 = por %p82, %p83
      %p86 = scmp.ne.s32.totalorder %s69, %s85
      %p87 = scmp.eq.s32.totalorder %s28, 0
      %p88 = por %p86, %p87
      %s89 = ssub.s32 %s30, %s37
      %p90 = scmp.eq.s32.totalorder %s89, 0
      %s92 = sadd.s32 %s91, 1
      %s93 = scalar_select %p90, %s91, %s92
      %p96 = pneg %p90
      %p97 = scmp.eq.s32.totalorder %s22, 5
      %p98 = por %p96, %p97
      %p99 = scmp.ne.s32.totalorder %s91, %s94
      %p100 = scmp.eq.s32.totalorder %s22, 0
      %p101 = por %p99, %p100
      %p102 = scmp.ne.s32.totalorder %s91, %s94
      %p103 = scmp.eq.s32.totalorder %s27, 5
      %p104 = por %p102, %p103
      %p105 = scmp.ne.s32.totalorder %s94, %s95
      %p106 = scmp.eq.s32.totalorder %s27, 0
      %p107 = por %p105, %p106
      %p108 = scmp.ne.s32.totalorder %s94, %s95
      %p109 = scmp.eq.s32.totalorder %s28, 5
      %p110 = por %p108, %p109
      %p112 = scmp.ne.s32.totalorder %s95, %s111
      %p113 = scmp.eq.s32.totalorder %s28, 0
      %p114 = por %p112, %p113
      %s115 = ssub.s32 %s30, %s37
      %s116 = ssub.s32 %s29, %s41
      %s117 = sor.u32 %s115, %s116
      %p118 = scmp.eq.s32.totalorder %s117, 0
      %s120 = sadd.s32 %s119, 1
      %s121 = scalar_select %p118, %s119, %s120
      %p124 = pneg %p118
      %p125 = scmp.eq.s32.totalorder %s22, 5
      %p126 = por %p124, %p125
      %p127 = scmp.ne.s32.totalorder %s119, %s122
      %p128 = scmp.eq.s32.totalorder %s22, 0
      %p129 = por %p127, %p128
      %p130 = scmp.ne.s32.totalorder %s119, %s122
      %p131 = scmp.eq.s32.totalorder %s27, 5
      %p132 = por %p130, %p131
      %p133 = scmp.ne.s32.totalorder %s122, %s123
      %p134 = scmp.eq.s32.totalorder %s27, 0
      %p135 = por %p133, %p134
      %p136 = scmp.ne.s32.totalorder %s122, %s123
      %p137 = scmp.eq.s32.totalorder %s28, 5
      %p138 = por %p136, %p137
      %p140 = scmp.ne.s32.totalorder %s123, %s139
      %p141 = scmp.eq.s32.totalorder %s28, 0
      %p142 = por %p140, %p141
      %s143 = ssub.s32 %s29, %s41
      %p144 = scmp.eq.s32.totalorder %s143, 0
      %s146 = sadd.s32 %s145, 1
      %s147 = scalar_select %p144, %s145, %s146
      %p150 = pneg %p144
      %p151 = scmp.eq.s32.totalorder %s22, 5
      %p152 = por %p150, %p151
      %p153 = scmp.ne.s32.totalorder %s145, %s148
      %p154 = scmp.eq.s32.totalorder %s22, 0
      %p155 = por %p153, %p154
      %p156 = scmp.ne.s32.totalorder %s145, %s148
      %p157 = scmp.eq.s32.totalorder %s27, 5
      %p158 = por %p156, %p157
      %p159 = scmp.ne.s32.totalorder %s148, %s149
      %p160 = scmp.eq.s32.totalorder %s27, 0
      %p161 = por %p159, %p160
      %p162 = scmp.ne.s32.totalorder %s148, %s149
      %p163 = scmp.eq.s32.totalorder %s28, 5
      %p164 = por %p162, %p163
      %p166 = scmp.ne.s32.totalorder %s149, %s165
      %p167 = scmp.eq.s32.totalorder %s28, 0
      %p168 = por %p166, %p167
      %s169 = ssub.s32 %s29, %s41
      %p170 = scmp.eq.s32.totalorder %s169, 0
      %s172 = sadd.s32 %s171, 1
      %s173 = scalar_select %p170, %s171, %s172
      %p176 = pneg %p170
      %p177 = scmp.eq.s32.totalorder %s22, 5
      %p178 = por %p176, %p177
      %p179 = scmp.ne.s32.totalorder %s171, %s174
      %p180 = scmp.eq.s32.totalorder %s22, 0
      %p181 = por %p179, %p180
      %p182 = scmp.ne.s32.totalorder %s171, %s174
      %p183 = scmp.eq.s32.totalorder %s27, 5
      %p184 = por %p182, %p183
      %p185 = scmp.ne.s32.totalorder %s174, %s175
      %p186 = scmp.eq.s32.totalorder %s27, 0
      %p187 = por %p185, %p186
      %p188 = scmp.ne.s32.totalorder %s174, %s175
      %p189 = scmp.eq.s32.totalorder %s28, 5
      %p190 = por %p188, %p189
      %p192 = scmp.ne.s32.totalorder %s175, %s191
      %p193 = scmp.eq.s32.totalorder %s28, 0
      %p194 = por %p192, %p193
      %s195 = ssub.s32 %s29, %s41
      %p196 = scmp.eq.s32.totalorder %s195, 0
      %s198 = sadd.s32 %s197, 1
      %s199 = scalar_select %p196, %s197, %s198
      %p202 = pneg %p196
      %p203 = scmp.eq.s32.totalorder %s22, 5
      %p204 = por %p202, %p203
      %p205 = scmp.ne.s32.totalorder %s197, %s200
      %p206 = scmp.eq.s32.totalorder %s22, 0
      %p207 = por %p205, %p206
      %p208 = scmp.ne.s32.totalorder %s197, %s200
      %p209 = scmp.eq.s32.totalorder %s27, 5
      %p210 = por %p208, %p209
      %p211 = scmp.ne.s32.totalorder %s200, %s201
      %p212 = scmp.eq.s32.totalorder %s27, 0
      %p213 = por %p211, %p212
      %p214 = scmp.ne.s32.totalorder %s200, %s201
      %p215 = scmp.eq.s32.totalorder %s28, 5
      %p216 = por %p214, %p215
      %p218 = scmp.ne.s32.totalorder %s201, %s217
      %p219 = scmp.eq.s32.totalorder %s28, 0
      %p220 = por %p218, %p219
      %s221 = ssub.s32 %s29, %s41
      %p222 = scmp.eq.s32.totalorder %s221, 0
      %s224 = sadd.s32 %s223, 1
      %s225 = scalar_select %p222, %s223, %s224
      %p228 = pneg %p222
      %p229 = scmp.eq.s32.totalorder %s22, 5
      %p230 = por %p228, %p229
      %p231 = scmp.ne.s32.totalorder %s223, %s226
      %p232 = scmp.eq.s32.totalorder %s22, 0
      %p233 = por %p231, %p232
      %p234 = scmp.ne.s32.totalorder %s223, %s226
      %p235 = scmp.eq.s32.totalorder %s27, 5
      %p236 = por %p234, %p235
      %p237 = scmp.ne.s32.totalorder %s226, %s227
      %p238 = scmp.eq.s32.totalorder %s27, 0
      %p239 = por %p237, %p238
      %p240 = scmp.ne.s32.totalorder %s226, %s227
      %p241 = scmp.eq.s32.totalorder %s28, 5
      %p242 = por %p240, %p241
      %p244 = scmp.ne.s32.totalorder %s227, %s243
      %p245 = scmp.eq.s32.totalorder %s28, 0
      %p246 = por %p244, %p245
      %p247 = scmp.le.s32.totalorder 1, %s22
      %p248 = scmp.lt.s32.totalorder %s22, 7
      %p249 = pnand %p247, %p248
      %p250 = pneg %p249
      // Predicated region
      $region9: #{text_model_forward.1} parent=5 // pred_check
        _
      $region10: #{text_model_forward.1} parent=5 // pred_check_branch
        %252 = sbr.rel (%p249) target = $region12
      $region11: #{text_model_forward.1} parent=5 // pred_region
        %s253 = ssub.s32 %s22, 1
        // Predicated region
        $region13: #{text_model_forward.1} parent=11 // pred_check
          %p254 = pneg %p55
        $region14: #{text_model_forward.1} parent=11 // pred_check_branch
          %256 = sbr.rel (%p254) target = $region16
        $region15: #{text_model_forward.1} parent=11 // pred_region
          _
        $region16: #{text_model_forward.1} parent=11 // pred_fallthru
          _
      $region12: #{text_model_forward.1} parent=5 // pred_fallthru
        _
      %p257 = scmp.lt.s32.totalorder %s22, 6
      // Predicated region
      $region17: #{text_model_forward.1} parent=5 // pred_check
        %p258 = pneg %p257
      $region18: #{text_model_forward.1} parent=5 // pred_check_branch
        %260 = sbr.rel (%p258) target = $region20
      $region19: #{text_model_forward.1} parent=5 // pred_region
        // Predicated region
        $region21: #{text_model_forward.1} parent=19 // pred_check
          %p261 = pneg %p75
        $region22: #{text_model_forward.1} parent=19 // pred_check_branch
          %263 = sbr.rel (%p261) target = $region24
        $region23: #{text_model_forward.1} parent=19 // pred_region
          %s264 = smul.u32 2, %s30
          %p265 = scmp.lt.s32.totalorder %s264, 5
          %s266 = scalar_select %p265, %s264, 5
          %s267 = smul.addr %s266, 8
          %s268 = scalar_lea.vmem %s1, %s267
          %s269 = smul.u32 2, %s30
        $region24: #{text_model_forward.1} parent=19 // pred_fallthru
          _
        // Predicated region
        $region25: #{text_model_forward.1} parent=19 // pred_check
          %p270 = pneg %p101
        $region26: #{text_model_forward.1} parent=19 // pred_check_branch
          %272 = sbr.rel (%p270) target = $region28
        $region27: #{text_model_forward.1} parent=19 // pred_region
          %s273 = smul.u32 2, %s30
          %p274 = scmp.lt.s32.totalorder %s273, 5
          %s275 = scalar_select %p274, %s273, 5
          %s276 = smul.addr %s275, 8
          %s277 = scalar_lea.vmem %s2, %s276
          %s278 = smul.u32 2, %s30
        $region28: #{text_model_forward.1} parent=19 // pred_fallthru
          _
        // Predicated region
        $region29: #{text_model_forward.1} parent=19 // pred_check
          %p279 = pneg %p129
        $region30: #{text_model_forward.1} parent=19 // pred_check_branch
          %281 = sbr.rel (%p279) target = $region32
        $region31: #{text_model_forward.1} parent=19 // pred_region
          %s282 = sand.u32 %s119, 1
          %s283 = scalar_lea.sflag [#allocation4], %s282
          %s284 = sand.u32 %s119, 1
          %s285 = smul.addr %s284, 1024
          %s286 = scalar_lea.vmem [#allocation3], %s285
          %s287 = smul.u32 16, %s30
          %s289 = ssub.s32 16384, 16384
          %290 = vsyncadd %s283, %s289
          %s291 = smul.addr %s287, 32
          %s292 = sadd.s32 %s29, %s291
          %s293 = smul.addr %s292, 64
          %s294 = scalar_lea.hbm %s3, %s293
          %s295 = sshll.u32 %s286, 4
          %s296 = int_to_ptr.vmem [resolvable:$true] %s295
          %301 = dma.hbm_to_vmem [thread:$0]  %s294, 16384, %s296, %s283, 128, 64, 4
        $region32: #{text_model_forward.1} parent=19 // pred_fallthru
          _
        // Predicated region
        $region33: #{text_model_forward.1} parent=19 // pred_check
          %p302 = pneg %p155
        $region34: #{text_model_forward.1} parent=19 // pred_check_branch
          %304 = sbr.rel (%p302) target = $region36
        $region35: #{text_model_forward.1} parent=19 // pred_region
          %s305 = sand.u32 %s22, 1
          %s306 = scalar_lea.sflag [#allocation6], %s305
          %s307 = sand.u32 %s145, 1
          %s308 = scalar_lea.vmem [#allocation5], %s307
          %s310 = ssub.s32 16, 16
          %311 = vsyncadd %s306, %s310
          %s312 = smul.addr %s29, 16
          %s313 = scalar_lea.hbm %s4, %s312
          %s315 = sshll.u32 %s308, 4
          %s316 = int_to_ptr.vmem [resolvable:$true] %s315
          %318 = dma.hbm_to_vmem [thread:$0]  %s313, 16, %s316, %s306
        $region36: #{text_model_forward.1} parent=19 // pred_fallthru
          _
        // Predicated region
        $region37: #{text_model_forward.1} parent=19 // pred_check
          %p319 = pneg %p181
        $region38: #{text_model_forward.1} parent=19 // pred_check_branch
          %321 = sbr.rel (%p319) target = $region40
        $region39: #{text_model_forward.1} parent=19 // pred_region
          %s322 = sand.u32 %s22, 1
          %s323 = scalar_lea.sflag [#allocation6], %s322
          %s324 = sand.u32 %s171, 1
          %s325 = smul.addr %s324, 128
          %s326 = scalar_lea.vmem [#allocation7], %s325
          %s327 = smul.u32 16, %s29
          %s329 = ssub.s32 2048, 2048
          %330 = vsyncadd %s323, %s329
          %s331 = smul.addr %s327, 128
          %s332 = scalar_lea.hbm %s5, %s331
          %s333 = sshll.u32 %s326, 4
          %s334 = int_to_ptr.vmem [resolvable:$true] %s333
          %339 = dma.hbm_to_vmem [thread:$0]  %s332, 2048, %s334, %s323, 128, 128, 8
        $region40: #{text_model_forward.1} parent=19 // pred_fallthru
          _
        // Predicated region
        $region41: #{text_model_forward.1} parent=19 // pred_check
          %p340 = pneg %p207
        $region42: #{text_model_forward.1} parent=19 // pred_check_branch
          %342 = sbr.rel (%p340) target = $region44
        $region43: #{text_model_forward.1} parent=19 // pred_region
          %s343 = sand.u32 %s197, 1
          %s344 = scalar_lea.sflag [#allocation9], %s343
          %s345 = sand.u32 %s197, 1
          %s346 = scalar_lea.vmem [#allocation8], %s345
          %s348 = ssub.s32 16, 16
          %349 = vsyncadd %s344, %s348
          %s350 = smul.addr %s29, 16
          %s351 = scalar_lea.hbm %s6, %s350
          %s353 = sshll.u32 %s346, 4
          %s354 = int_to_ptr.vmem [resolvable:$true] %s353
          %356 = dma.hbm_to_vmem [thread:$0]  %s351, 16, %s354, %s344
        $region44: #{text_model_forward.1} parent=19 // pred_fallthru
          _
      $region20: #{text_model_forward.1} parent=5 // pred_fallthru
        _
      %p357 = scmp.le.s32.totalorder 1, %s22
      %p358 = scmp.lt.s32.totalorder %s22, 7
      %p359 = pnand %p357, %p358
      %p360 = pneg %p359
      // Predicated region
      $region45: #{text_model_forward.1} parent=5 // pred_check
        _
      $region46: #{text_model_forward.1} parent=5 // pred_check_branch
        %362 = sbr.rel (%p359) target = $region48
      $region47: #{text_model_forward.1} parent=5 // pred_region
        %s363 = ssub.s32 %s22, 1
        %s364 = sand.u32 %s122, 1
        %s365 = scalar_lea.sflag [#allocation4], %s364
        %s366 = sand.u32 %s122, 1
        %s367 = smul.addr %s366, 1024
        %s368 = scalar_lea.vmem [#allocation3], %s367
        // Predicated region
        $region49: #{text_model_forward.1} parent=47 // pred_check
          %p369 = pneg %p135
        $region50: #{text_model_forward.1} parent=47 // pred_check_branch
          %371 = sbr.rel (%p369) target = $region52
        $region51: #{text_model_forward.1} parent=47 // pred_region
          %372 = dma.done %s365, 16384
        $region52: #{text_model_forward.1} parent=47 // pred_fallthru
          _
        %s373 = sand.u32 %s27, 1
        %s374 = scalar_lea.sflag [#allocation6], %s373
        %s375 = sand.u32 %s148, 1
        %s376 = scalar_lea.vmem [#allocation5], %s375
        // Predicated region
        $region53: #{text_model_forward.1} parent=47 // pred_check
          %p377 = pneg %p161
        $region54: #{text_model_forward.1} parent=47 // pred_check_branch
          %379 = sbr.rel (%p377) target = $region56
        $region55: #{text_model_forward.1} parent=47 // pred_region
          %380 = dma.done %s374, 16
        $region56: #{text_model_forward.1} parent=47 // pred_fallthru
          _
        %s381 = sand.u32 %s27, 1
        %s382 = scalar_lea.sflag [#allocation6], %s381
        %s383 = sand.u32 %s174, 1
        %s384 = smul.addr %s383, 128
        %s385 = scalar_lea.vmem [#allocation7], %s384
        // Predicated region
        $region57: #{text_model_forward.1} parent=47 // pred_check
          %p386 = pneg %p187
        $region58: #{text_model_forward.1} parent=47 // pred_check_branch
          %388 = sbr.rel (%p386) target = $region60
        $region59: #{text_model_forward.1} parent=47 // pred_region
          %389 = dma.done %s382, 2048
        $region60: #{text_model_forward.1} parent=47 // pred_fallthru
          _
        %s390 = sand.u32 %s200, 1
        %s391 = scalar_lea.sflag [#allocation9], %s390
        %s392 = sand.u32 %s200, 1
        %s393 = scalar_lea.vmem [#allocation8], %s392
        // Predicated region
        $region61: #{text_model_forward.1} parent=47 // pred_check
          %p394 = pneg %p213
        $region62: #{text_model_forward.1} parent=47 // pred_check_branch
          %396 = sbr.rel (%p394) target = $region64
        $region63: #{text_model_forward.1} parent=47 // pred_region
          %397 = dma.done %s391, 16
        $region64: #{text_model_forward.1} parent=47 // pred_fallthru
          _
        %p398 = pneg %p55
        %p399 = pneg %p52
        %s400 = smul.u32 2, %s32
        %p401 = scmp.lt.s32.totalorder %s400, 5
        %s402 = scalar_select %p401, %s400, 5
        %s403 = smul.addr %s402, 8
        %s404 = scalar_lea.vmem %s1, %s403
        %p405 = pneg %p81
        %p406 = pneg %p78
        %s407 = smul.u32 2, %s32
        %p408 = scmp.lt.s32.totalorder %s407, 5
        %s409 = scalar_select %p408, %s407, 5
        %s410 = smul.addr %s409, 8
        %s411 = scalar_lea.vmem %s2, %s410
        %p412 = pneg %p107
        %p413 = pneg %p104
        %s414 = sand.u32 %s122, 1
        %s415 = scalar_lea.sflag [#allocation4], %s414
        %s416 = sand.u32 %s122, 1
        %s417 = smul.addr %s416, 1024
        %s418 = scalar_lea.vmem [#allocation3], %s417
        %p419 = pneg %p135
        %p420 = pneg %p132
        %s421 = sand.u32 %s27, 1
        %s422 = scalar_lea.sflag [#allocation6], %s421
        %s423 = sand.u32 %s148, 1
        %s424 = scalar_lea.vmem [#allocation5], %s423
        %p425 = pneg %p161
        %p426 = pneg %p158
        %s427 = sand.u32 %s27, 1
        %s428 = scalar_lea.sflag [#allocation6], %s427
        %s429 = sand.u32 %s174, 1
        %s430 = smul.addr %s429, 128
        %s431 = scalar_lea.vmem [#allocation7], %s430
        %p432 = pneg %p187
        %p433 = pneg %p184
        %s434 = sand.u32 %s200, 1
        %s435 = scalar_lea.sflag [#allocation9], %s434
        %s436 = sand.u32 %s200, 1
        %s437 = scalar_lea.vmem [#allocation8], %s436
        %p438 = pneg %p213
        %p439 = pneg %p210
        %p440 = pneg %p239
        %p441 = pneg %p236
        %p442 = scmp.lt.s32.totalorder %s31, 1
        %s443 = scalar_select %p442, %s31, 1
        %s444 = scalar_lea.vmem %s7, %s443
        %s445 = smul.u32 2, %s32
        %p446 = scmp.lt.s32.totalorder %s445, 5
        %s447 = scalar_select %p446, %s445, 5
        %s448 = smul.addr %s447, 8
        %s449 = scalar_lea.vmem %s1, %s448
        %s450 = smul.u32 2, %s32
        %s451 = smul.u32 2, %s32
        %p452 = scmp.lt.s32.totalorder %s451, 5
        %s453 = scalar_select %p452, %s451, 5
        %s454 = smul.addr %s453, 8
        %s455 = scalar_lea.vmem %s2, %s454
        %s456 = smul.u32 2, %s32
        %s457 = smul.u32 16, %s32
        %s458 = smul.u32 16, %s31
        %p459 = scmp.lt.s32.totalorder %s31, 1
        %s460 = scalar_select %p459, %s31, 1
        %s461 = scalar_lea.vmem %s7, %s460
        %p463 = scmp.eq.s32.totalorder %s32, 0
        // Predicated region
        $region65: #{text_model_forward.1} parent=47 // pred_check
          %p464 = pneg %p463
        $region66: #{text_model_forward.1} parent=47 // pred_check_branch
          %466 = sbr.rel (%p464) target = $region68
        $region67: #{text_model_forward.1} parent=47 // pred_region
          %467 = vst [vmem:[#allocation2] sm:$0x1] 0.0
        $region68: #{text_model_forward.1} parent=47 // pred_fallthru
          _
        %v468 = vld [vmem:[%s449] sm:$0xff]
        %v469 = vld [vmem:[%s449 + $0x8] sm:$0xff]
        %v470 = vld [vmem:[%s0] sm:$0xff]
        %v471 = vld [vmem:[%s0 + $0x8] sm:$0xff]
        %v472 = vld [vmem:[%s455] sm:$0xff]
        %v473 = vld [vmem:[%s455 + $0x8] sm:$0xff]
        %475 = vset.pattern.permute.xlu0 0
        %476 = vperm.xlu0 %475, %v472
        %v477 = vpop.permute.xlu0 %476
        %480 = vset.pattern.permute.xlu0 0
        %481 = vperm.xlu0 %480, %v473
        %v482 = vpop.permute.xlu0 %481
        %vm484 = vcmask 130048
        %v486 = vsel %vm484, %v468, 0
        %v489 = vsel %vm484, %v469, 0
        %491 = vmatprep.subr.mxu0 0.0
        %492 = vmatpush1.msra.mxu0 0.0
        %493 = vmatprep.subr.mxu0 0.0
        %494 = vmatpush1.msra.mxu0 0.0
        %495 = vmatprep.subr.mxu0 0.0
        %496 = vmatpush1.msra.mxu0 0.0
        %497 = vmatprep.subr.mxu0 0.0
        %498 = vmatpush1.msra.mxu0 0.0
        %499 = vmatprep.subr.mxu0 0.0
        %500 = vmatpush1.msra.mxu0 0.0
        %501 = vmatprep.subr.mxu0 0.0
        %502 = vmatpush1.msra.mxu0 0.0
        %503 = vmatprep.subr.mxu0 0.0
        %504 = vmatpush1.msra.mxu0 0.0
        %505 = vmatprep.subr.mxu0 0.0
        %506 = vmatpush1.msra.mxu0 0.0
        %507 = vmatprep.subr.mxu0 0.0
        %508 = vmatpush1.msra.mxu0 0.0
        %509 = vmatprep.subr.mxu0 0.0
        %510 = vmatpush1.msra.mxu0 0.0
        %511 = vmatprep.subr.mxu0 0.0
        %512 = vmatpush1.msra.mxu0 0.0
        %513 = vmatprep.subr.mxu0 0.0
        %514 = vmatpush1.msra.mxu0 0.0
        %515 = vmatprep.subr.mxu0 0.0
        %516 = vmatpush1.msra.mxu0 0.0
        %517 = vmatprep.subr.mxu0 0.0
        %518 = vmatpush1.msra.mxu0 0.0
        %519 = vmatprep.subr.mxu0 0.0
        %520 = vmatpush1.msra.mxu0 %v471
        %521 = vmatprep.subr.mxu0 0.0
        %522 = vmatpush1.msra.mxu0 %v470
        %523 = vmatprep.subr.mxu0 0.0
        %524 = vmatpush2.msra.mxu0 0.0
        %525 = vmatprep.subr.mxu0 0.0
        %526 = vmatpush2.msra.mxu0 0.0
        %527 = vmatprep.subr.mxu0 0.0
        %528 = vmatpush2.msra.mxu0 0.0
        %529 = vmatprep.subr.mxu0 0.0
        %530 = vmatpush2.msra.mxu0 0.0
        %531 = vmatprep.subr.mxu0 0.0
        %532 = vmatpush2.msra.mxu0 0.0
        %533 = vmatprep.subr.mxu0 0.0
        %534 = vmatpush2.msra.mxu0 0.0
        %535 = vmatprep.subr.mxu0 0.0
        %536 = vmatpush2.msra.mxu0 0.0
        %537 = vmatprep.subr.mxu0 0.0
        %538 = vmatpush2.msra.mxu0 0.0
        %539 = vmatprep.subr.mxu0 0.0
        %540 = vmatpush2.msra.mxu0 0.0
        %541 = vmatprep.subr.mxu0 0.0
        %542 = vmatpush2.msra.mxu0 0.0
        %543 = vmatprep.subr.mxu0 0.0
        %544 = vmatpush2.msra.mxu0 0.0
        %545 = vmatprep.subr.mxu0 0.0
        %546 = vmatpush2.msra.mxu0 0.0
        %547 = vmatprep.subr.mxu0 0.0
        %548 = vmatpush2.msra.mxu0 0.0
        %549 = vmatprep.subr.mxu0 0.0
        %550 = vmatpush2.msra.mxu0 0.0
        %551 = vmatprep.subr.mxu0 0.0
        %552 = vmatpush2.msra.mxu0 0.0
        %553 = vmatprep.subr.mxu0 0.0
        %554 = vmatpush2.msra.mxu0 0.0
        %555 = vmatprep.mubr.f32.mxu0 0.0
        %556 = vmatmul.mubr.f32.gmra.mxu0 %v486
        %v557 = vpop.f32.mrf.mxu0
        %v558 = vadd.f32 %v477, %v557
        %v559 = vpop.f32.mrf.mxu0
        %560 = vmatprep.mubr.f32.mxu0 0.0
        %561 = vmatmul.mubr.f32.gmra.mxu0 %v489
        %v562 = vpop.f32.mrf.mxu0
        %v563 = vadd.f32 %v482, %v562
        %v564 = vpop.f32.mrf.mxu0
        %565 = vdwg.mxu0
        %v566 = vtanh.pop %v558
        %v567 = vtanh.pop %v563
        %v568 = vlaneseq
        %v569 = vand.u32 %v568, 127
        %vm570 = vcmp.lt.s32.totalorder %v569, 9
        %v571 = vsel %vm570, %v566, 0.0
        %v572 = vsel %vm570, %v567, 0.0
        %v573 = vpack.c.bf16 %v572, %v571
        %v574 = vld [vmem:[%s368] sm:$0xf]
        %v575 = vld [vmem:[%s368 + $0x4] sm:$0xf]
        %v576 = vld [vmem:[%s368 + $0x8] sm:$0xf]
        %v577 = vld [vmem:[%s368 + $0xc] sm:$0xf]
        %v578 = vld [vmem:[%s368 + $0x10] sm:$0xf]
        %v579 = vld [vmem:[%s368 + $0x14] sm:$0xf]
        %v580 = vld [vmem:[%s368 + $0x18] sm:$0xf]
        %v581 = vld [vmem:[%s368 + $0x1c] sm:$0xf]
        %v582 = vld [vmem:[%s368 + $0x20] sm:$0xf]
        %v583 = vld [vmem:[%s368 + $0x24] sm:$0xf]
        %v584 = vld [vmem:[%s368 + $0x28] sm:$0xf]
        %v585 = vld [vmem:[%s368 + $0x2c] sm:$0xf]
        %v586 = vld [vmem:[%s368 + $0x30] sm:$0xf]
        %v587 = vld [vmem:[%s368 + $0x34] sm:$0xf]
        %v588 = vld [vmem:[%s368 + $0x38] sm:$0xf]
        %v589 = vld [vmem:[%s368 + $0x3c] sm:$0xf]
        %s590 = scalar_lea.vmem %s368, 64 [#allocation3]
        %v591 = vld [vmem:[%s590] sm:$0xf]
        %v592 = vld [vmem:[%s590 + $0x4] sm:$0xf]
        %v593 = vld [vmem:[%s590 + $0x8] sm:$0xf]
        %v594 = vld [vmem:[%s590 + $0xc] sm:$0xf]
        %v595 = vld [vmem:[%s590 + $0x10] sm:$0xf]
        %v596 = vld [vmem:[%s590 + $0x14] sm:$0xf]
        %v597 = vld [vmem:[%s590 + $0x18] sm:$0xf]
        %v598 = vld [vmem:[%s590 + $0x1c] sm:$0xf]
        %v599 = vld [vmem:[%s590 + $0x20] sm:$0xf]
        %v600 = vld [vmem:[%s590 + $0x24] sm:$0xf]
        %v601 = vld [vmem:[%s590 + $0x28] sm:$0xf]
        %v602 = vld [vmem:[%s590 + $0x2c] sm:$0xf]
        %v603 = vld [vmem:[%s590 + $0x30] sm:$0xf]
        %v604 = vld [vmem:[%s590 + $0x34] sm:$0xf]
        %v605 = vld [vmem:[%s590 + $0x38] sm:$0xf]
        %v606 = vld [vmem:[%s590 + $0x3c] sm:$0xf]
        %v608 = vshrl.u32 %v573, 16
        %v627 = vunpack.c.l.b16 %v591
        %v628 = vunpack.c.l.b16 %v592
        %v629 = vunpack.c.l.b16 %v593
        %v630 = vunpack.c.l.b16 %v594
        %v631 = vunpack.c.l.b16 %v595
        %v632 = vunpack.c.l.b16 %v596
        %v633 = vunpack.c.l.b16 %v597
        %v634 = vunpack.c.l.b16 %v598
        %v635 = vunpack.c.l.b16 %v599
        %v636 = vunpack.c.l.b16 %v600
        %v637 = vunpack.c.l.b16 %v601
        %v638 = vunpack.c.l.b16 %v602
        %v639 = vunpack.c.l.b16 %v603
        %v640 = vunpack.c.l.b16 %v604
        %v641 = vunpack.c.l.b16 %v605
        %v642 = vunpack.c.l.b16 %v606
        %v643 = vpack.c.b16 %v628, %v627
        %v644 = vpack.c.b16 %v630, %v629
        %v645 = vpack.c.b16 %v632, %v631
        %v646 = vpack.c.b16 %v634, %v633
        %v647 = vpack.c.b16 %v636, %v635
        %v648 = vpack.c.b16 %v638, %v637
        %v649 = vpack.c.b16 %v640, %v639
        %v650 = vpack.c.b16 %v642, %v641
        %659 = vmatprep.subr.bf16.mxu0 0
        %660 = vmatpush1.bf16.msra.mxu0 %v650
        %661 = vmatprep.subr.bf16.mxu0 0
        %662 = vmatpush1.bf16.msra.mxu0 %v649
        %663 = vmatprep.subr.bf16.mxu0 0
        %664 = vmatpush1.bf16.msra.mxu0 %v648
        %665 = vmatprep.subr.bf16.mxu0 0
        %666 = vmatpush1.bf16.msra.mxu0 %v647
        %667 = vmatprep.subr.bf16.mxu0 0
        %668 = vmatpush1.bf16.msra.mxu0 %v646
        %669 = vmatprep.subr.bf16.mxu0 0
        %670 = vmatpush1.bf16.msra.mxu0 %v645
        %671 = vmatprep.subr.bf16.mxu0 0
        %672 = vmatpush1.bf16.msra.mxu0 %v644
        %673 = vmatprep.subr.bf16.mxu0 0
        %674 = vmatpush1.bf16.msra.mxu0 %v643
        %675 = vmatprep.subr.bf16.mxu0 0
        %676 = vmatpush2.bf16.msra.mxu0 0
        %677 = vmatprep.subr.bf16.mxu0 0
        %678 = vmatpush2.bf16.msra.mxu0 0
        %679 = vmatprep.subr.bf16.mxu0 0
        %680 = vmatpush2.bf16.msra.mxu0 0
        %681 = vmatprep.subr.bf16.mxu0 0
        %682 = vmatpush2.bf16.msra.mxu0 0
        %683 = vmatprep.subr.bf16.mxu0 0
        %684 = vmatpush2.bf16.msra.mxu0 0
        %685 = vmatprep.subr.bf16.mxu0 0
        %686 = vmatpush2.bf16.msra.mxu0 0
        %687 = vmatprep.subr.bf16.mxu0 0
        %688 = vmatpush2.bf16.msra.mxu0 0
        %689 = vmatprep.subr.bf16.mxu0 0
        %690 = vmatpush2.bf16.msra.mxu0 0
        %691 = vmatprep.mubr.bf16.mxu0 0
        %692 = vmatmul.mubr.bf16.gmra.mxu0 %v608
        %v693 = vpop.f32.mrf.mxu0
        %v694 = vadd.f32 0.0, %v693
        %v695 = vpop.f32.mrf.mxu0
        %v696 = vpop.f32.mrf.mxu0
        %v697 = vpop.f32.mrf.mxu0
        %698 = vdwg.mxu0
        %v715 = vunpack.c.l.b16 %v574
        %v716 = vunpack.c.l.b16 %v575
        %v717 = vunpack.c.l.b16 %v576
        %v718 = vunpack.c.l.b16 %v577
        %v719 = vunpack.c.l.b16 %v578
        %v720 = vunpack.c.l.b16 %v579
        %v721 = vunpack.c.l.b16 %v580
        %v722 = vunpack.c.l.b16 %v581
        %v723 = vunpack.c.l.b16 %v582
        %v724 = vunpack.c.l.b16 %v583
        %v725 = vunpack.c.l.b16 %v584
        %v726 = vunpack.c.l.b16 %v585
        %v727 = vunpack.c.l.b16 %v586
        %v728 = vunpack.c.l.b16 %v587
        %v729 = vunpack.c.l.b16 %v588
        %v730 = vunpack.c.l.b16 %v589
        %v731 = vpack.c.b16 %v716, %v715
        %v732 = vpack.c.b16 %v718, %v717
        %v733 = vpack.c.b16 %v720, %v719
        %v734 = vpack.c.b16 %v722, %v721
        %v735 = vpack.c.b16 %v724, %v723
        %v736 = vpack.c.b16 %v726, %v725
        %v737 = vpack.c.b16 %v728, %v727
        %v738 = vpack.c.b16 %v730, %v729
        %747 = vmatprep.subr.bf16.mxu0 0
        %748 = vmatpush1.bf16.msra.mxu0 %v738
        %749 = vmatprep.subr.bf16.mxu0 0
        %750 = vmatpush1.bf16.msra.mxu0 %v737
        %751 = vmatprep.subr.bf16.mxu0 0
        %752 = vmatpush1.bf16.msra.mxu0 %v736
        %753 = vmatprep.subr.bf16.mxu0 0
        %754 = vmatpush1.bf16.msra.mxu0 %v735
        %755 = vmatprep.subr.bf16.mxu0 0
        %756 = vmatpush1.bf16.msra.mxu0 %v734
        %757 = vmatprep.subr.bf16.mxu0 0
        %758 = vmatpush1.bf16.msra.mxu0 %v733
        %759 = vmatprep.subr.bf16.mxu0 0
        %760 = vmatpush1.bf16.msra.mxu0 %v732
        %761 = vmatprep.subr.bf16.mxu0 0
        %762 = vmatpush1.bf16.msra.mxu0 %v731
        %763 = vmatprep.subr.bf16.mxu0 0
        %764 = vmatpush2.bf16.msra.mxu0 0
        %765 = vmatprep.subr.bf16.mxu0 0
        %766 = vmatpush2.bf16.msra.mxu0 0
        %767 = vmatprep.subr.bf16.mxu0 0
        %768 = vmatpush2.bf16.msra.mxu0 0
        %769 = vmatprep.subr.bf16.mxu0 0
        %770 = vmatpush2.bf16.msra.mxu0 0
        %771 = vmatprep.subr.bf16.mxu0 0
        %772 = vmatpush2.bf16.msra.mxu0 0
        %773 = vmatprep.subr.bf16.mxu0 0
        %774 = vmatpush2.bf16.msra.mxu0 0
        %775 = vmatprep.subr.bf16.mxu0 0
        %776 = vmatpush2.bf16.msra.mxu0 0
        %777 = vmatprep.subr.bf16.mxu0 0
        %778 = vmatpush2.bf16.msra.mxu0 0
        %779 = vmatprep.mubr.bf16.mxu0 0
        %780 = vmatmul.mubr.bf16.gmra.mxu0 %v573
        %v781 = vpop.f32.mrf.mxu0
        %v782 = vadd.f32 %v694, %v781
        %v783 = vpop.f32.mrf.mxu0
        %v784 = vpop.f32.mrf.mxu0
        %v785 = vpop.f32.mrf.mxu0
        %786 = vdwg.mxu0
        %s787 = scalar_lea.vmem %s368, 128 [#allocation3]
        %v788 = vld [vmem:[%s787] sm:$0xf]
        %v789 = vld [vmem:[%s787 + $0x4] sm:$0xf]
        %v790 = vld [vmem:[%s787 + $0x8] sm:$0xf]
        %v791 = vld [vmem:[%s787 + $0xc] sm:$0xf]
        %v792 = vld [vmem:[%s787 + $0x10] sm:$0xf]
        %v793 = vld [vmem:[%s787 + $0x14] sm:$0xf]
        %v794 = vld [vmem:[%s787 + $0x18] sm:$0xf]
        %v795 = vld [vmem:[%s787 + $0x1c] sm:$0xf]
        %v796 = vld [vmem:[%s787 + $0x20] sm:$0xf]
        %v797 = vld [vmem:[%s787 + $0x24] sm:$0xf]
        %v798 = vld [vmem:[%s787 + $0x28] sm:$0xf]
        %v799 = vld [vmem:[%s787 + $0x2c] sm:$0xf]
        %v800 = vld [vmem:[%s787 + $0x30] sm:$0xf]
        %v801 = vld [vmem:[%s787 + $0x34] sm:$0xf]
        %v802 = vld [vmem:[%s787 + $0x38] sm:$0xf]
        %v803 = vld [vmem:[%s787 + $0x3c] sm:$0xf]
        %v805 = vrot.slane %v573, 1
        %v823 = vunpack.c.l.b16 %v788
        %v824 = vunpack.c.l.b16 %v789
        %v825 = vunpack.c.l.b16 %v790
        %v826 = vunpack.c.l.b16 %v791
        %v827 = vunpack.c.l.b16 %v792
        %v828 = vunpack.c.l.b16 %v793
        %v829 = vunpack.c.l.b16 %v794
        %v830 = vunpack.c.l.b16 %v795
        %v831 = vunpack.c.l.b16 %v796
        %v832 = vunpack.c.l.b16 %v797
        %v833 = vunpack.c.l.b16 %v798
        %v834 = vunpack.c.l.b16 %v799
        %v835 = vunpack.c.l.b16 %v800
        %v836 = vunpack.c.l.b16 %v801
        %v837 = vunpack.c.l.b16 %v802
        %v838 = vunpack.c.l.b16 %v803
        %v839 = vpack.c.b16 %v824, %v823
        %v840 = vpack.c.b16 %v826, %v825
        %v841 = vpack.c.b16 %v828, %v827
        %v842 = vpack.c.b16 %v830, %v829
        %v843 = vpack.c.b16 %v832, %v831
        %v844 = vpack.c.b16 %v834, %v833
        %v845 = vpack.c.b16 %v836, %v835
        %v846 = vpack.c.b16 %v838, %v837
        %855 = vmatprep.subr.bf16.mxu0 0
        %856 = vmatpush1.bf16.msra.mxu0 %v846
        %857 = vmatprep.subr.bf16.mxu0 0
        %858 = vmatpush1.bf16.msra.mxu0 %v845
        %859 = vmatprep.subr.bf16.mxu0 0
        %860 = vmatpush1.bf16.msra.mxu0 %v844
        %861 = vmatprep.subr.bf16.mxu0 0
        %862 = vmatpush1.bf16.msra.mxu0 %v843
        %863 = vmatprep.subr.bf16.mxu0 0
        %864 = vmatpush1.bf16.msra.mxu0 %v842
        %865 = vmatprep.subr.bf16.mxu0 0
        %866 = vmatpush1.bf16.msra.mxu0 %v841
        %867 = vmatprep.subr.bf16.mxu0 0
        %868 = vmatpush1.bf16.msra.mxu0 %v840
        %869 = vmatprep.subr.bf16.mxu0 0
        %870 = vmatpush1.bf16.msra.mxu0 %v839
        %871 = vmatprep.subr.bf16.mxu0 0
        %872 = vmatpush2.bf16.msra.mxu0 0
        %873 = vmatprep.subr.bf16.mxu0 0
        %874 = vmatpush2.bf16.msra.mxu0 0
        %875 = vmatprep.subr.bf16.mxu0 0
        %876 = vmatpush2.bf16.msra.mxu0 0
        %877 = vmatprep.subr.bf16.mxu0 0
        %878 = vmatpush2.bf16.msra.mxu0 0
        %879 = vmatprep.subr.bf16.mxu0 0
        %880 = vmatpush2.bf16.msra.mxu0 0
        %881 = vmatprep.subr.bf16.mxu0 0
        %882 = vmatpush2.bf16.msra.mxu0 0
        %883 = vmatprep.subr.bf16.mxu0 0
        %884 = vmatpush2.bf16.msra.mxu0 0
        %885 = vmatprep.subr.bf16.mxu0 0
        %886 = vmatpush2.bf16.msra.mxu0 0
        %887 = vmatprep.mubr.bf16.mxu0 0
        %888 = vmatmul.mubr.bf16.gmra.mxu0 %v805
        %v889 = vpop.f32.mrf.mxu0
        %v890 = vadd.f32 0.0, %v889
        %v891 = vpop.f32.mrf.mxu0
        %v892 = vpop.f32.mrf.mxu0
        %v893 = vpop.f32.mrf.mxu0
        %894 = vdwg.mxu0
        %v895 = vadd.f32 %v782, %v890
        %s896 = scalar_lea.vmem %s368, 192 [#allocation3]
        %v897 = vld [vmem:[%s896] sm:$0xf]
        %v898 = vld [vmem:[%s896 + $0x4] sm:$0xf]
        %v899 = vld [vmem:[%s896 + $0x8] sm:$0xf]
        %v900 = vld [vmem:[%s896 + $0xc] sm:$0xf]
        %v901 = vld [vmem:[%s896 + $0x10] sm:$0xf]
        %v902 = vld [vmem:[%s896 + $0x14] sm:$0xf]
        %v903 = vld [vmem:[%s896 + $0x18] sm:$0xf]
        %v904 = vld [vmem:[%s896 + $0x1c] sm:$0xf]
        %v905 = vld [vmem:[%s896 + $0x20] sm:$0xf]
        %v906 = vld [vmem:[%s896 + $0x24] sm:$0xf]
        %v907 = vld [vmem:[%s896 + $0x28] sm:$0xf]
        %v908 = vld [vmem:[%s896 + $0x2c] sm:$0xf]
        %v909 = vld [vmem:[%s896 + $0x30] sm:$0xf]
        %v910 = vld [vmem:[%s896 + $0x34] sm:$0xf]
        %v911 = vld [vmem:[%s896 + $0x38] sm:$0xf]
        %v912 = vld [vmem:[%s896 + $0x3c] sm:$0xf]
        %v913 = vrot.slane %v608, 1
        %v931 = vunpack.c.l.b16 %v897
        %v932 = vunpack.c.l.b16 %v898
        %v933 = vunpack.c.l.b16 %v899
        %v934 = vunpack.c.l.b16 %v900
        %v935 = vunpack.c.l.b16 %v901
        %v936 = vunpack.c.l.b16 %v902
        %v937 = vunpack.c.l.b16 %v903
        %v938 = vunpack.c.l.b16 %v904
        %v939 = vunpack.c.l.b16 %v905
        %v940 = vunpack.c.l.b16 %v906
        %v941 = vunpack.c.l.b16 %v907
        %v942 = vunpack.c.l.b16 %v908
        %v943 = vunpack.c.l.b16 %v909
        %v944 = vunpack.c.l.b16 %v910
        %v945 = vunpack.c.l.b16 %v911
        %v946 = vunpack.c.l.b16 %v912
        %v947 = vpack.c.b16 %v932, %v931
        %v948 = vpack.c.b16 %v934, %v933
        %v949 = vpack.c.b16 %v936, %v935
        %v950 = vpack.c.b16 %v938, %v937
        %v951 = vpack.c.b16 %v940, %v939
        %v952 = vpack.c.b16 %v942, %v941
        %v953 = vpack.c.b16 %v944, %v943
        %v954 = vpack.c.b16 %v946, %v945
        %963 = vmatprep.subr.bf16.mxu0 0
        %964 = vmatpush1.bf16.msra.mxu0 %v954
        %965 = vmatprep.subr.bf16.mxu0 0
        %966 = vmatpush1.bf16.msra.mxu0 %v953
        %967 = vmatprep.subr.bf16.mxu0 0
        %968 = vmatpush1.bf16.msra.mxu0 %v952
        %969 = vmatprep.subr.bf16.mxu0 0
        %970 = vmatpush1.bf16.msra.mxu0 %v951
        %971 = vmatprep.subr.bf16.mxu0 0
        %972 = vmatpush1.bf16.msra.mxu0 %v950
        %973 = vmatprep.subr.bf16.mxu0 0
        %974 = vmatpush1.bf16.msra.mxu0 %v949
        %975 = vmatprep.subr.bf16.mxu0 0
        %976 = vmatpush1.bf16.msra.mxu0 %v948
        %977 = vmatprep.subr.bf16.mxu0 0
        %978 = vmatpush1.bf16.msra.mxu0 %v947
        %979 = vmatprep.subr.bf16.mxu0 0
        %980 = vmatpush2.bf16.msra.mxu0 0
        %981 = vmatprep.subr.bf16.mxu0 0
        %982 = vmatpush2.bf16.msra.mxu0 0
        %983 = vmatprep.subr.bf16.mxu0 0
        %984 = vmatpush2.bf16.msra.mxu0 0
        %985 = vmatprep.subr.bf16.mxu0 0
        %986 = vmatpush2.bf16.msra.mxu0 0
        %987 = vmatprep.subr.bf16.mxu0 0
        %988 = vmatpush2.bf16.msra.mxu0 0
        %989 = vmatprep.subr.bf16.mxu0 0
        %990 = vmatpush2.bf16.msra.mxu0 0
        %991 = vmatprep.subr.bf16.mxu0 0
        %992 = vmatpush2.bf16.msra.mxu0 0
        %993 = vmatprep.subr.bf16.mxu0 0
        %994 = vmatpush2.bf16.msra.mxu0 0
        %995 = vmatprep.mubr.bf16.mxu0 0
        %996 = vmatmul.mubr.bf16.gmra.mxu0 %v913
        %v997 = vpop.f32.mrf.mxu0
        %v998 = vadd.f32 0.0, %v997
        %v999 = vpop.f32.mrf.mxu0
        %v1000 = vpop.f32.mrf.mxu0
        %v1001 = vpop.f32.mrf.mxu0
        %1002 = vdwg.mxu0
        %v1003 = vadd.f32 %v895, %v998
        %s1004 = scalar_lea.vmem %s368, 256 [#allocation3]
        %v1005 = vld [vmem:[%s1004] sm:$0xf]
        %v1006 = vld [vmem:[%s1004 + $0x4] sm:$0xf]
        %v1007 = vld [vmem:[%s1004 + $0x8] sm:$0xf]
        %v1008 = vld [vmem:[%s1004 + $0xc] sm:$0xf]
        %v1009 = vld [vmem:[%s1004 + $0x10] sm:$0xf]
        %v1010 = vld [vmem:[%s1004 + $0x14] sm:$0xf]
        %v1011 = vld [vmem:[%s1004 + $0x18] sm:$0xf]
        %v1012 = vld [vmem:[%s1004 + $0x1c] sm:$0xf]
        %v1013 = vld [vmem:[%s1004 + $0x20] sm:$0xf]
        %v1014 = vld [vmem:[%s1004 + $0x24] sm:$0xf]
        %v1015 = vld [vmem:[%s1004 + $0x28] sm:$0xf]
        %v1016 = vld [vmem:[%s1004 + $0x2c] sm:$0xf]
        %v1017 = vld [vmem:[%s1004 + $0x30] sm:$0xf]
        %v1018 = vld [vmem:[%s1004 + $0x34] sm:$0xf]
        %v1019 = vld [vmem:[%s1004 + $0x38] sm:$0xf]
        %v1020 = vld [vmem:[%s1004 + $0x3c] sm:$0xf]
        %v1021 = vrot.slane %v573, 2
        %v1039 = vunpack.c.l.b16 %v1005
        %v1040 = vunpack.c.l.b16 %v1006
        %v1041 = vunpack.c.l.b16 %v1007
        %v1042 = vunpack.c.l.b16 %v1008
        %v1043 = vunpack.c.l.b16 %v1009
        %v1044 = vunpack.c.l.b16 %v1010
        %v1045 = vunpack.c.l.b16 %v1011
        %v1046 = vunpack.c.l.b16 %v1012
        %v1047 = vunpack.c.l.b16 %v1013
        %v1048 = vunpack.c.l.b16 %v1014
        %v1049 = vunpack.c.l.b16 %v1015
        %v1050 = vunpack.c.l.b16 %v1016
        %v1051 = vunpack.c.l.b16 %v1017
        %v1052 = vunpack.c.l.b16 %v1018
        %v1053 = vunpack.c.l.b16 %v1019
        %v1054 = vunpack.c.l.b16 %v1020
        %v1055 = vpack.c.b16 %v1040, %v1039
        %v1056 = vpack.c.b16 %v1042, %v1041
        %v1057 = vpack.c.b16 %v1044, %v1043
        %v1058 = vpack.c.b16 %v1046, %v1045
        %v1059 = vpack.c.b16 %v1048, %v1047
        %v1060 = vpack.c.b16 %v1050, %v1049
        %v1061 = vpack.c.b16 %v1052, %v1051
        %v1062 = vpack.c.b16 %v1054, %v1053
        %1071 = vmatprep.subr.bf16.mxu0 0
        %1072 = vmatpush1.bf16.msra.mxu0 %v1062
        %1073 = vmatprep.subr.bf16.mxu0 0
        %1074 = vmatpush1.bf16.msra.mxu0 %v1061
        %1075 = vmatprep.subr.bf16.mxu0 0
        %1076 = vmatpush1.bf16.msra.mxu0 %v1060
        %1077 = vmatprep.subr.bf16.mxu0 0
        %1078 = vmatpush1.bf16.msra.mxu0 %v1059
        %1079 = vmatprep.subr.bf16.mxu0 0
        %1080 = vmatpush1.bf16.msra.mxu0 %v1058
        %1081 = vmatprep.subr.bf16.mxu0 0
        %1082 = vmatpush1.bf16.msra.mxu0 %v1057
        %1083 = vmatprep.subr.bf16.mxu0 0
        %1084 = vmatpush1.bf16.msra.mxu0 %v1056
        %1085 = vmatprep.subr.bf16.mxu0 0
        %1086 = vmatpush1.bf16.msra.mxu0 %v1055
        %1087 = vmatprep.subr.bf16.mxu0 0
        %1088 = vmatpush2.bf16.msra.mxu0 0
        %1089 = vmatprep.subr.bf16.mxu0 0
        %1090 = vmatpush2.bf16.msra.mxu0 0
        %1091 = vmatprep.subr.bf16.mxu0 0
        %1092 = vmatpush2.bf16.msra.mxu0 0
        %1093 = vmatprep.subr.bf16.mxu0 0
        %1094 = vmatpush2.bf16.msra.mxu0 0
        %1095 = vmatprep.subr.bf16.mxu0 0
        %1096 = vmatpush2.bf16.msra.mxu0 0
        %1097 = vmatprep.subr.bf16.mxu0 0
        %1098 = vmatpush2.bf16.msra.mxu0 0
        %1099 = vmatprep.subr.bf16.mxu0 0
        %1100 = vmatpush2.bf16.msra.mxu0 0
        %1101 = vmatprep.subr.bf16.mxu0 0
        %1102 = vmatpush2.bf16.msra.mxu0 0
        %1103 = vmatprep.mubr.bf16.mxu0 0
        %1104 = vmatmul.mubr.bf16.gmra.mxu0 %v1021
        %v1105 = vpop.f32.mrf.mxu0
        %v1106 = vadd.f32 0.0, %v1105
        %v1107 = vpop.f32.mrf.mxu0
        %v1108 = vpop.f32.mrf.mxu0
        %v1109 = vpop.f32.mrf.mxu0
        %1110 = vdwg.mxu0
        %v1111 = vadd.f32 %v1003, %v1106
        %s1112 = scalar_lea.vmem %s368, 320 [#allocation3]
        %v1113 = vld [vmem:[%s1112] sm:$0xf]
        %v1114 = vld [vmem:[%s1112 + $0x4] sm:$0xf]
        %v1115 = vld [vmem:[%s1112 + $0x8] sm:$0xf]
        %v1116 = vld [vmem:[%s1112 + $0xc] sm:$0xf]
        %v1117 = vld [vmem:[%s1112 + $0x10] sm:$0xf]
        %v1118 = vld [vmem:[%s1112 + $0x14] sm:$0xf]
        %v1119 = vld [vmem:[%s1112 + $0x18] sm:$0xf]
        %v1120 = vld [vmem:[%s1112 + $0x1c] sm:$0xf]
        %v1121 = vld [vmem:[%s1112 + $0x20] sm:$0xf]
        %v1122 = vld [vmem:[%s1112 + $0x24] sm:$0xf]
        %v1123 = vld [vmem:[%s1112 + $0x28] sm:$0xf]
        %v1124 = vld [vmem:[%s1112 + $0x2c] sm:$0xf]
        %v1125 = vld [vmem:[%s1112 + $0x30] sm:$0xf]
        %v1126 = vld [vmem:[%s1112 + $0x34] sm:$0xf]
        %v1127 = vld [vmem:[%s1112 + $0x38] sm:$0xf]
        %v1128 = vld [vmem:[%s1112 + $0x3c] sm:$0xf]
        %v1129 = vrot.slane %v608, 2
        %v1147 = vunpack.c.l.b16 %v1113
        %v1148 = vunpack.c.l.b16 %v1114
        %v1149 = vunpack.c.l.b16 %v1115
        %v1150 = vunpack.c.l.b16 %v1116
        %v1151 = vunpack.c.l.b16 %v1117
        %v1152 = vunpack.c.l.b16 %v1118
        %v1153 = vunpack.c.l.b16 %v1119
        %v1154 = vunpack.c.l.b16 %v1120
        %v1155 = vunpack.c.l.b16 %v1121
        %v1156 = vunpack.c.l.b16 %v1122
        %v1157 = vunpack.c.l.b16 %v1123
        %v1158 = vunpack.c.l.b16 %v1124
        %v1159 = vunpack.c.l.b16 %v1125
        %v1160 = vunpack.c.l.b16 %v1126
        %v1161 = vunpack.c.l.b16 %v1127
        %v1162 = vunpack.c.l.b16 %v1128
        %v1163 = vpack.c.b16 %v1148, %v1147
        %v1164 = vpack.c.b16 %v1150, %v1149
        %v1165 = vpack.c.b16 %v1152, %v1151
        %v1166 = vpack.c.b16 %v1154, %v1153
        %v1167 = vpack.c.b16 %v1156, %v1155
        %v1168 = vpack.c.b16 %v1158, %v1157
        %v1169 = vpack.c.b16 %v1160, %v1159
        %v1170 = vpack.c.b16 %v1162, %v1161
        %1179 = vmatprep.subr.bf16.mxu0 0
        %1180 = vmatpush1.bf16.msra.mxu0 %v1170
        %1181 = vmatprep.subr.bf16.mxu0 0
        %1182 = vmatpush1.bf16.msra.mxu0 %v1169
        %1183 = vmatprep.subr.bf16.mxu0 0
        %1184 = vmatpush1.bf16.msra.mxu0 %v1168
        %1185 = vmatprep.subr.bf16.mxu0 0
        %1186 = vmatpush1.bf16.msra.mxu0 %v1167
        %1187 = vmatprep.subr.bf16.mxu0 0
        %1188 = vmatpush1.bf16.msra.mxu0 %v1166
        %1189 = vmatprep.subr.bf16.mxu0 0
        %1190 = vmatpush1.bf16.msra.mxu0 %v1165
        %1191 = vmatprep.subr.bf16.mxu0 0
        %1192 = vmatpush1.bf16.msra.mxu0 %v1164
        %1193 = vmatprep.subr.bf16.mxu0 0
        %1194 = vmatpush1.bf16.msra.mxu0 %v1163
        %1195 = vmatprep.subr.bf16.mxu0 0
        %1196 = vmatpush2.bf16.msra.mxu0 0
        %1197 = vmatprep.subr.bf16.mxu0 0
        %1198 = vmatpush2.bf16.msra.mxu0 0
        %1199 = vmatprep.subr.bf16.mxu0 0
        %1200 = vmatpush2.bf16.msra.mxu0 0
        %1201 = vmatprep.subr.bf16.mxu0 0
        %1202 = vmatpush2.bf16.msra.mxu0 0
        %1203 = vmatprep.subr.bf16.mxu0 0
        %1204 = vmatpush2.bf16.msra.mxu0 0
        %1205 = vmatprep.subr.bf16.mxu0 0
        %1206 = vmatpush2.bf16.msra.mxu0 0
        %1207 = vmatprep.subr.bf16.mxu0 0
        %1208 = vmatpush2.bf16.msra.mxu0 0
        %1209 = vmatprep.subr.bf16.mxu0 0
        %1210 = vmatpush2.bf16.msra.mxu0 0
        %1211 = vmatprep.mubr.bf16.mxu0 0
        %1212 = vmatmul.mubr.bf16.gmra.mxu0 %v1129
        %v1213 = vpop.f32.mrf.mxu0
        %v1214 = vadd.f32 0.0, %v1213
        %v1215 = vpop.f32.mrf.mxu0
        %v1216 = vpop.f32.mrf.mxu0
        %v1217 = vpop.f32.mrf.mxu0
        %1218 = vdwg.mxu0
        %v1219 = vadd.f32 %v1111, %v1214
        %s1220 = scalar_lea.vmem %s368, 384 [#allocation3]
        %v1221 = vld [vmem:[%s1220] sm:$0xf]
        %v1222 = vld [vmem:[%s1220 + $0x4] sm:$0xf]
        %v1223 = vld [vmem:[%s1220 + $0x8] sm:$0xf]
        %v1224 = vld [vmem:[%s1220 + $0xc] sm:$0xf]
        %v1225 = vld [vmem:[%s1220 + $0x10] sm:$0xf]
        %v1226 = vld [vmem:[%s1220 + $0x14] sm:$0xf]
        %v1227 = vld [vmem:[%s1220 + $0x18] sm:$0xf]
        %v1228 = vld [vmem:[%s1220 + $0x1c] sm:$0xf]
        %v1229 = vld [vmem:[%s1220 + $0x20] sm:$0xf]
        %v1230 = vld [vmem:[%s1220 + $0x24] sm:$0xf]
        %v1231 = vld [vmem:[%s1220 + $0x28] sm:$0xf]
        %v1232 = vld [vmem:[%s1220 + $0x2c] sm:$0xf]
        %v1233 = vld [vmem:[%s1220 + $0x30] sm:$0xf]
        %v1234 = vld [vmem:[%s1220 + $0x34] sm:$0xf]
        %v1235 = vld [vmem:[%s1220 + $0x38] sm:$0xf]
        %v1236 = vld [vmem:[%s1220 + $0x3c] sm:$0xf]
        %v1237 = vrot.slane %v573, 3
        %v1255 = vunpack.c.l.b16 %v1221
        %v1256 = vunpack.c.l.b16 %v1222
        %v1257 = vunpack.c.l.b16 %v1223
        %v1258 = vunpack.c.l.b16 %v1224
        %v1259 = vunpack.c.l.b16 %v1225
        %v1260 = vunpack.c.l.b16 %v1226
        %v1261 = vunpack.c.l.b16 %v1227
        %v1262 = vunpack.c.l.b16 %v1228
        %v1263 = vunpack.c.l.b16 %v1229
        %v1264 = vunpack.c.l.b16 %v1230
        %v1265 = vunpack.c.l.b16 %v1231
        %v1266 = vunpack.c.l.b16 %v1232
        %v1267 = vunpack.c.l.b16 %v1233
        %v1268 = vunpack.c.l.b16 %v1234
        %v1269 = vunpack.c.l.b16 %v1235
        %v1270 = vunpack.c.l.b16 %v1236
        %v1271 = vpack.c.b16 %v1256, %v1255
        %v1272 = vpack.c.b16 %v1258, %v1257
        %v1273 = vpack.c.b16 %v1260, %v1259
        %v1274 = vpack.c.b16 %v1262, %v1261
        %v1275 = vpack.c.b16 %v1264, %v1263
        %v1276 = vpack.c.b16 %v1266, %v1265
        %v1277 = vpack.c.b16 %v1268, %v1267
        %v1278 = vpack.c.b16 %v1270, %v1269
        %1287 = vmatprep.subr.bf16.mxu0 0
        %1288 = vmatpush1.bf16.msra.mxu0 %v1278
        %1289 = vmatprep.subr.bf16.mxu0 0
        %1290 = vmatpush1.bf16.msra.mxu0 %v1277
        %1291 = vmatprep.subr.bf16.mxu0 0
        %1292 = vmatpush1.bf16.msra.mxu0 %v1276
        %1293 = vmatprep.subr.bf16.mxu0 0
        %1294 = vmatpush1.bf16.msra.mxu0 %v1275
        %1295 = vmatprep.subr.bf16.mxu0 0
        %1296 = vmatpush1.bf16.msra.mxu0 %v1274
        %1297 = vmatprep.subr.bf16.mxu0 0
        %1298 = vmatpush1.bf16.msra.mxu0 %v1273
        %1299 = vmatprep.subr.bf16.mxu0 0
        %1300 = vmatpush1.bf16.msra.mxu0 %v1272
        %1301 = vmatprep.subr.bf16.mxu0 0
        %1302 = vmatpush1.bf16.msra.mxu0 %v1271
        %1303 = vmatprep.subr.bf16.mxu0 0
        %1304 = vmatpush2.bf16.msra.mxu0 0
        %1305 = vmatprep.subr.bf16.mxu0 0
        %1306 = vmatpush2.bf16.msra.mxu0 0
        %1307 = vmatprep.subr.bf16.mxu0 0
        %1308 = vmatpush2.bf16.msra.mxu0 0
        %1309 = vmatprep.subr.bf16.mxu0 0
        %1310 = vmatpush2.bf16.msra.mxu0 0
        %1311 = vmatprep.subr.bf16.mxu0 0
        %1312 = vmatpush2.bf16.msra.mxu0 0
        %1313 = vmatprep.subr.bf16.mxu0 0
        %1314 = vmatpush2.bf16.msra.mxu0 0
        %1315 = vmatprep.subr.bf16.mxu0 0
        %1316 = vmatpush2.bf16.msra.mxu0 0
        %1317 = vmatprep.subr.bf16.mxu0 0
        %1318 = vmatpush2.bf16.msra.mxu0 0
        %1319 = vmatprep.mubr.bf16.mxu0 0
        %1320 = vmatmul.mubr.bf16.gmra.mxu0 %v1237
        %v1321 = vpop.f32.mrf.mxu0
        %v1322 = vadd.f32 0.0, %v1321
        %v1323 = vpop.f32.mrf.mxu0
        %v1324 = vpop.f32.mrf.mxu0
        %v1325 = vpop.f32.mrf.mxu0
        %1326 = vdwg.mxu0
        %v1327 = vadd.f32 %v1219, %v1322
        %s1328 = scalar_lea.vmem %s368, 448 [#allocation3]
        %v1329 = vld [vmem:[%s1328] sm:$0xf]
        %v1330 = vld [vmem:[%s1328 + $0x4] sm:$0xf]
        %v1331 = vld [vmem:[%s1328 + $0x8] sm:$0xf]
        %v1332 = vld [vmem:[%s1328 + $0xc] sm:$0xf]
        %v1333 = vld [vmem:[%s1328 + $0x10] sm:$0xf]
        %v1334 = vld [vmem:[%s1328 + $0x14] sm:$0xf]
        %v1335 = vld [vmem:[%s1328 + $0x18] sm:$0xf]
        %v1336 = vld [vmem:[%s1328 + $0x1c] sm:$0xf]
        %v1337 = vld [vmem:[%s1328 + $0x20] sm:$0xf]
        %v1338 = vld [vmem:[%s1328 + $0x24] sm:$0xf]
        %v1339 = vld [vmem:[%s1328 + $0x28] sm:$0xf]
        %v1340 = vld [vmem:[%s1328 + $0x2c] sm:$0xf]
        %v1341 = vld [vmem:[%s1328 + $0x30] sm:$0xf]
        %v1342 = vld [vmem:[%s1328 + $0x34] sm:$0xf]
        %v1343 = vld [vmem:[%s1328 + $0x38] sm:$0xf]
        %v1344 = vld [vmem:[%s1328 + $0x3c] sm:$0xf]
        %v1345 = vrot.slane %v608, 3
        %v1363 = vunpack.c.l.b16 %v1329
        %v1364 = vunpack.c.l.b16 %v1330
        %v1365 = vunpack.c.l.b16 %v1331
        %v1366 = vunpack.c.l.b16 %v1332
        %v1367 = vunpack.c.l.b16 %v1333
        %v1368 = vunpack.c.l.b16 %v1334
        %v1369 = vunpack.c.l.b16 %v1335
        %v1370 = vunpack.c.l.b16 %v1336
        %v1371 = vunpack.c.l.b16 %v1337
        %v1372 = vunpack.c.l.b16 %v1338
        %v1373 = vunpack.c.l.b16 %v1339
        %v1374 = vunpack.c.l.b16 %v1340
        %v1375 = vunpack.c.l.b16 %v1341
        %v1376 = vunpack.c.l.b16 %v1342
        %v1377 = vunpack.c.l.b16 %v1343
        %v1378 = vunpack.c.l.b16 %v1344
        %v1379 = vpack.c.b16 %v1364, %v1363
        %v1380 = vpack.c.b16 %v1366, %v1365
        %v1381 = vpack.c.b16 %v1368, %v1367
        %v1382 = vpack.c.b16 %v1370, %v1369
        %v1383 = vpack.c.b16 %v1372, %v1371
        %v1384 = vpack.c.b16 %v1374, %v1373
        %v1385 = vpack.c.b16 %v1376, %v1375
        %v1386 = vpack.c.b16 %v1378, %v1377
        %1395 = vmatprep.subr.bf16.mxu0 0
        %1396 = vmatpush1.bf16.msra.mxu0 %v1386
        %1397 = vmatprep.subr.bf16.mxu0 0
        %1398 = vmatpush1.bf16.msra.mxu0 %v1385
        %1399 = vmatprep.subr.bf16.mxu0 0
        %1400 = vmatpush1.bf16.msra.mxu0 %v1384
        %1401 = vmatprep.subr.bf16.mxu0 0
        %1402 = vmatpush1.bf16.msra.mxu0 %v1383
        %1403 = vmatprep.subr.bf16.mxu0 0
        %1404 = vmatpush1.bf16.msra.mxu0 %v1382
        %1405 = vmatprep.subr.bf16.mxu0 0
        %1406 = vmatpush1.bf16.msra.mxu0 %v1381
        %1407 = vmatprep.subr.bf16.mxu0 0
        %1408 = vmatpush1.bf16.msra.mxu0 %v1380
        %1409 = vmatprep.subr.bf16.mxu0 0
        %1410 = vmatpush1.bf16.msra.mxu0 %v1379
        %1411 = vmatprep.subr.bf16.mxu0 0
        %1412 = vmatpush2.bf16.msra.mxu0 0
        %1413 = vmatprep.subr.bf16.mxu0 0
        %1414 = vmatpush2.bf16.msra.mxu0 0
        %1415 = vmatprep.subr.bf16.mxu0 0
        %1416 = vmatpush2.bf16.msra.mxu0 0
        %1417 = vmatprep.subr.bf16.mxu0 0
        %1418 = vmatpush2.bf16.msra.mxu0 0
        %1419 = vmatprep.subr.bf16.mxu0 0
        %1420 = vmatpush2.bf16.msra.mxu0 0
        %1421 = vmatprep.subr.bf16.mxu0 0
        %1422 = vmatpush2.bf16.msra.mxu0 0
        %1423 = vmatprep.subr.bf16.mxu0 0
        %1424 = vmatpush2.bf16.msra.mxu0 0
        %1425 = vmatprep.subr.bf16.mxu0 0
        %1426 = vmatpush2.bf16.msra.mxu0 0
        %1427 = vmatprep.mubr.bf16.mxu0 0
        %1428 = vmatmul.mubr.bf16.gmra.mxu0 %v1345
        %v1429 = vpop.f32.mrf.mxu0
        %v1430 = vadd.f32 0.0, %v1429
        %v1431 = vpop.f32.mrf.mxu0
        %v1432 = vpop.f32.mrf.mxu0
        %v1433 = vpop.f32.mrf.mxu0
        %1434 = vdwg.mxu0
        %v1435 = vadd.f32 %v1327, %v1430
        %s1436 = scalar_lea.vmem %s368, 512 [#allocation3]
        %v1437 = vld [vmem:[%s1436] sm:$0xf]
        %v1438 = vld [vmem:[%s1436 + $0x4] sm:$0xf]
        %v1439 = vld [vmem:[%s1436 + $0x8] sm:$0xf]
        %v1440 = vld [vmem:[%s1436 + $0xc] sm:$0xf]
        %v1441 = vld [vmem:[%s1436 + $0x10] sm:$0xf]
        %v1442 = vld [vmem:[%s1436 + $0x14] sm:$0xf]
        %v1443 = vld [vmem:[%s1436 + $0x18] sm:$0xf]
        %v1444 = vld [vmem:[%s1436 + $0x1c] sm:$0xf]
        %v1445 = vld [vmem:[%s1436 + $0x20] sm:$0xf]
        %v1446 = vld [vmem:[%s1436 + $0x24] sm:$0xf]
        %v1447 = vld [vmem:[%s1436 + $0x28] sm:$0xf]
        %v1448 = vld [vmem:[%s1436 + $0x2c] sm:$0xf]
        %v1449 = vld [vmem:[%s1436 + $0x30] sm:$0xf]
        %v1450 = vld [vmem:[%s1436 + $0x34] sm:$0xf]
        %v1451 = vld [vmem:[%s1436 + $0x38] sm:$0xf]
        %v1452 = vld [vmem:[%s1436 + $0x3c] sm:$0xf]
        %v1453 = vrot.slane %v573, 4
        %v1471 = vunpack.c.l.b16 %v1437
        %v1472 = vunpack.c.l.b16 %v1438
        %v1473 = vunpack.c.l.b16 %v1439
        %v1474 = vunpack.c.l.b16 %v1440
        %v1475 = vunpack.c.l.b16 %v1441
        %v1476 = vunpack.c.l.b16 %v1442
        %v1477 = vunpack.c.l.b16 %v1443
        %v1478 = vunpack.c.l.b16 %v1444
        %v1479 = vunpack.c.l.b16 %v1445
        %v1480 = vunpack.c.l.b16 %v1446
        %v1481 = vunpack.c.l.b16 %v1447
        %v1482 = vunpack.c.l.b16 %v1448
        %v1483 = vunpack.c.l.b16 %v1449
        %v1484 = vunpack.c.l.b16 %v1450
        %v1485 = vunpack.c.l.b16 %v1451
        %v1486 = vunpack.c.l.b16 %v1452
        %v1487 = vpack.c.b16 %v1472, %v1471
        %v1488 = vpack.c.b16 %v1474, %v1473
        %v1489 = vpack.c.b16 %v1476, %v1475
        %v1490 = vpack.c.b16 %v1478, %v1477
        %v1491 = vpack.c.b16 %v1480, %v1479
        %v1492 = vpack.c.b16 %v1482, %v1481
        %v1493 = vpack.c.b16 %v1484, %v1483
        %v1494 = vpack.c.b16 %v1486, %v1485
        %1503 = vmatprep.subr.bf16.mxu0 0
        %1504 = vmatpush1.bf16.msra.mxu0 %v1494
        %1505 = vmatprep.subr.bf16.mxu0 0
        %1506 = vmatpush1.bf16.msra.mxu0 %v1493
        %1507 = vmatprep.subr.bf16.mxu0 0
        %1508 = vmatpush1.bf16.msra.mxu0 %v1492
        %1509 = vmatprep.subr.bf16.mxu0 0
        %1510 = vmatpush1.bf16.msra.mxu0 %v1491
        %1511 = vmatprep.subr.bf16.mxu0 0
        %1512 = vmatpush1.bf16.msra.mxu0 %v1490
        %1513 = vmatprep.subr.bf16.mxu0 0
        %1514 = vmatpush1.bf16.msra.mxu0 %v1489
        %1515 = vmatprep.subr.bf16.mxu0 0
        %1516 = vmatpush1.bf16.msra.mxu0 %v1488
        %1517 = vmatprep.subr.bf16.mxu0 0
        %1518 = vmatpush1.bf16.msra.mxu0 %v1487
        %1519 = vmatprep.subr.bf16.mxu0 0
        %1520 = vmatpush2.bf16.msra.mxu0 0
        %1521 = vmatprep.subr.bf16.mxu0 0
        %1522 = vmatpush2.bf16.msra.mxu0 0
        %1523 = vmatprep.subr.bf16.mxu0 0
        %1524 = vmatpush2.bf16.msra.mxu0 0
        %1525 = vmatprep.subr.bf16.mxu0 0
        %1526 = vmatpush2.bf16.msra.mxu0 0
        %1527 = vmatprep.subr.bf16.mxu0 0
        %1528 = vmatpush2.bf16.msra.mxu0 0
        %1529 = vmatprep.subr.bf16.mxu0 0
        %1530 = vmatpush2.bf16.msra.mxu0 0
        %1531 = vmatprep.subr.bf16.mxu0 0
        %1532 = vmatpush2.bf16.msra.mxu0 0
        %1533 = vmatprep.subr.bf16.mxu0 0
        %1534 = vmatpush2.bf16.msra.mxu0 0
        %1535 = vmatprep.mubr.bf16.mxu0 0
        %1536 = vmatmul.mubr.bf16.gmra.mxu0 %v1453
        %v1537 = vpop.f32.mrf.mxu0
        %v1538 = vadd.f32 0.0, %v1537
        %v1539 = vpop.f32.mrf.mxu0
        %v1540 = vpop.f32.mrf.mxu0
        %v1541 = vpop.f32.mrf.mxu0
        %1542 = vdwg.mxu0
        %v1543 = vadd.f32 %v1435, %v1538
        %s1544 = scalar_lea.vmem %s368, 576 [#allocation3]
        %v1545 = vld [vmem:[%s1544] sm:$0xf]
        %v1546 = vld [vmem:[%s1544 + $0x4] sm:$0xf]
        %v1547 = vld [vmem:[%s1544 + $0x8] sm:$0xf]
        %v1548 = vld [vmem:[%s1544 + $0xc] sm:$0xf]
        %v1549 = vld [vmem:[%s1544 + $0x10] sm:$0xf]
        %v1550 = vld [vmem:[%s1544 + $0x14] sm:$0xf]
        %v1551 = vld [vmem:[%s1544 + $0x18] sm:$0xf]
        %v1552 = vld [vmem:[%s1544 + $0x1c] sm:$0xf]
        %v1553 = vld [vmem:[%s1544 + $0x20] sm:$0xf]
        %v1554 = vld [vmem:[%s1544 + $0x24] sm:$0xf]
        %v1555 = vld [vmem:[%s1544 + $0x28] sm:$0xf]
        %v1556 = vld [vmem:[%s1544 + $0x2c] sm:$0xf]
        %v1557 = vld [vmem:[%s1544 + $0x30] sm:$0xf]
        %v1558 = vld [vmem:[%s1544 + $0x34] sm:$0xf]
        %v1559 = vld [vmem:[%s1544 + $0x38] sm:$0xf]
        %v1560 = vld [vmem:[%s1544 + $0x3c] sm:$0xf]
        %v1561 = vrot.slane %v608, 4
        %v1579 = vunpack.c.l.b16 %v1545
        %v1580 = vunpack.c.l.b16 %v1546
        %v1581 = vunpack.c.l.b16 %v1547
        %v1582 = vunpack.c.l.b16 %v1548
        %v1583 = vunpack.c.l.b16 %v1549
        %v1584 = vunpack.c.l.b16 %v1550
        %v1585 = vunpack.c.l.b16 %v1551
        %v1586 = vunpack.c.l.b16 %v1552
        %v1587 = vunpack.c.l.b16 %v1553
        %v1588 = vunpack.c.l.b16 %v1554
        %v1589 = vunpack.c.l.b16 %v1555
        %v1590 = vunpack.c.l.b16 %v1556
        %v1591 = vunpack.c.l.b16 %v1557
        %v1592 = vunpack.c.l.b16 %v1558
        %v1593 = vunpack.c.l.b16 %v1559
        %v1594 = vunpack.c.l.b16 %v1560
        %v1595 = vpack.c.b16 %v1580, %v1579
        %v1596 = vpack.c.b16 %v1582, %v1581
        %v1597 = vpack.c.b16 %v1584, %v1583
        %v1598 = vpack.c.b16 %v1586, %v1585
        %v1599 = vpack.c.b16 %v1588, %v1587
        %v1600 = vpack.c.b16 %v1590, %v1589
        %v1601 = vpack.c.b16 %v1592, %v1591
        %v1602 = vpack.c.b16 %v1594, %v1593
        %1611 = vmatprep.subr.bf16.mxu0 0
        %1612 = vmatpush1.bf16.msra.mxu0 %v1602
        %1613 = vmatprep.subr.bf16.mxu0 0
        %1614 = vmatpush1.bf16.msra.mxu0 %v1601
        %1615 = vmatprep.subr.bf16.mxu0 0
        %1616 = vmatpush1.bf16.msra.mxu0 %v1600
        %1617 = vmatprep.subr.bf16.mxu0 0
        %1618 = vmatpush1.bf16.msra.mxu0 %v1599
        %1619 = vmatprep.subr.bf16.mxu0 0
        %1620 = vmatpush1.bf16.msra.mxu0 %v1598
        %1621 = vmatprep.subr.bf16.mxu0 0
        %1622 = vmatpush1.bf16.msra.mxu0 %v1597
        %1623 = vmatprep.subr.bf16.mxu0 0
        %1624 = vmatpush1.bf16.msra.mxu0 %v1596
        %1625 = vmatprep.subr.bf16.mxu0 0
        %1626 = vmatpush1.bf16.msra.mxu0 %v1595
        %1627 = vmatprep.subr.bf16.mxu0 0
        %1628 = vmatpush2.bf16.msra.mxu0 0
        %1629 = vmatprep.subr.bf16.mxu0 0
        %1630 = vmatpush2.bf16.msra.mxu0 0
        %1631 = vmatprep.subr.bf16.mxu0 0
        %1632 = vmatpush2.bf16.msra.mxu0 0
        %1633 = vmatprep.subr.bf16.mxu0 0
        %1634 = vmatpush2.bf16.msra.mxu0 0
        %1635 = vmatprep.subr.bf16.mxu0 0
        %1636 = vmatpush2.bf16.msra.mxu0 0
        %1637 = vmatprep.subr.bf16.mxu0 0
        %1638 = vmatpush2.bf16.msra.mxu0 0
        %1639 = vmatprep.subr.bf16.mxu0 0
        %1640 = vmatpush2.bf16.msra.mxu0 0
        %1641 = vmatprep.subr.bf16.mxu0 0
        %1642 = vmatpush2.bf16.msra.mxu0 0
        %1643 = vmatprep.mubr.bf16.mxu0 0
        %1644 = vmatmul.mubr.bf16.gmra.mxu0 %v1561
        %v1645 = vpop.f32.mrf.mxu0
        %v1646 = vadd.f32 0.0, %v1645
        %v1647 = vpop.f32.mrf.mxu0
        %v1648 = vpop.f32.mrf.mxu0
        %v1649 = vpop.f32.mrf.mxu0
        %1650 = vdwg.mxu0
        %v1651 = vadd.f32 %v1543, %v1646
        %s1652 = scalar_lea.vmem %s368, 640 [#allocation3]
        %v1653 = vld [vmem:[%s1652] sm:$0xf]
        %v1654 = vld [vmem:[%s1652 + $0x4] sm:$0xf]
        %v1655 = vld [vmem:[%s1652 + $0x8] sm:$0xf]
        %v1656 = vld [vmem:[%s1652 + $0xc] sm:$0xf]
        %v1657 = vld [vmem:[%s1652 + $0x10] sm:$0xf]
        %v1658 = vld [vmem:[%s1652 + $0x14] sm:$0xf]
        %v1659 = vld [vmem:[%s1652 + $0x18] sm:$0xf]
        %v1660 = vld [vmem:[%s1652 + $0x1c] sm:$0xf]
        %v1661 = vld [vmem:[%s1652 + $0x20] sm:$0xf]
        %v1662 = vld [vmem:[%s1652 + $0x24] sm:$0xf]
        %v1663 = vld [vmem:[%s1652 + $0x28] sm:$0xf]
        %v1664 = vld [vmem:[%s1652 + $0x2c] sm:$0xf]
        %v1665 = vld [vmem:[%s1652 + $0x30] sm:$0xf]
        %v1666 = vld [vmem:[%s1652 + $0x34] sm:$0xf]
        %v1667 = vld [vmem:[%s1652 + $0x38] sm:$0xf]
        %v1668 = vld [vmem:[%s1652 + $0x3c] sm:$0xf]
        %v1669 = vrot.slane %v573, 5
        %v1687 = vunpack.c.l.b16 %v1653
        %v1688 = vunpack.c.l.b16 %v1654
        %v1689 = vunpack.c.l.b16 %v1655
        %v1690 = vunpack.c.l.b16 %v1656
        %v1691 = vunpack.c.l.b16 %v1657
        %v1692 = vunpack.c.l.b16 %v1658
        %v1693 = vunpack.c.l.b16 %v1659
        %v1694 = vunpack.c.l.b16 %v1660
        %v1695 = vunpack.c.l.b16 %v1661
        %v1696 = vunpack.c.l.b16 %v1662
        %v1697 = vunpack.c.l.b16 %v1663
        %v1698 = vunpack.c.l.b16 %v1664
        %v1699 = vunpack.c.l.b16 %v1665
        %v1700 = vunpack.c.l.b16 %v1666
        %v1701 = vunpack.c.l.b16 %v1667
        %v1702 = vunpack.c.l.b16 %v1668
        %v1703 = vpack.c.b16 %v1688, %v1687
        %v1704 = vpack.c.b16 %v1690, %v1689
        %v1705 = vpack.c.b16 %v1692, %v1691
        %v1706 = vpack.c.b16 %v1694, %v1693
        %v1707 = vpack.c.b16 %v1696, %v1695
        %v1708 = vpack.c.b16 %v1698, %v1697
        %v1709 = vpack.c.b16 %v1700, %v1699
        %v1710 = vpack.c.b16 %v1702, %v1701
        %1719 = vmatprep.subr.bf16.mxu0 0
        %1720 = vmatpush1.bf16.msra.mxu0 %v1710
        %1721 = vmatprep.subr.bf16.mxu0 0
        %1722 = vmatpush1.bf16.msra.mxu0 %v1709
        %1723 = vmatprep.subr.bf16.mxu0 0
        %1724 = vmatpush1.bf16.msra.mxu0 %v1708
        %1725 = vmatprep.subr.bf16.mxu0 0
        %1726 = vmatpush1.bf16.msra.mxu0 %v1707
        %1727 = vmatprep.subr.bf16.mxu0 0
        %1728 = vmatpush1.bf16.msra.mxu0 %v1706
        %1729 = vmatprep.subr.bf16.mxu0 0
        %1730 = vmatpush1.bf16.msra.mxu0 %v1705
        %1731 = vmatprep.subr.bf16.mxu0 0
        %1732 = vmatpush1.bf16.msra.mxu0 %v1704
        %1733 = vmatprep.subr.bf16.mxu0 0
        %1734 = vmatpush1.bf16.msra.mxu0 %v1703
        %1735 = vmatprep.subr.bf16.mxu0 0
        %1736 = vmatpush2.bf16.msra.mxu0 0
        %1737 = vmatprep.subr.bf16.mxu0 0
        %1738 = vmatpush2.bf16.msra.mxu0 0
        %1739 = vmatprep.subr.bf16.mxu0 0
        %1740 = vmatpush2.bf16.msra.mxu0 0
        %1741 = vmatprep.subr.bf16.mxu0 0
        %1742 = vmatpush2.bf16.msra.mxu0 0
        %1743 = vmatprep.subr.bf16.mxu0 0
        %1744 = vmatpush2.bf16.msra.mxu0 0
        %1745 = vmatprep.subr.bf16.mxu0 0
        %1746 = vmatpush2.bf16.msra.mxu0 0
        %1747 = vmatprep.subr.bf16.mxu0 0
        %1748 = vmatpush2.bf16.msra.mxu0 0
        %1749 = vmatprep.subr.bf16.mxu0 0
        %1750 = vmatpush2.bf16.msra.mxu0 0
        %1751 = vmatprep.mubr.bf16.mxu0 0
        %1752 = vmatmul.mubr.bf16.gmra.mxu0 %v1669
        %v1753 = vpop.f32.mrf.mxu0
        %v1754 = vadd.f32 0.0, %v1753
        %v1755 = vpop.f32.mrf.mxu0
        %v1756 = vpop.f32.mrf.mxu0
        %v1757 = vpop.f32.mrf.mxu0
        %1758 = vdwg.mxu0
        %v1759 = vadd.f32 %v1651, %v1754
        %s1760 = scalar_lea.vmem %s368, 704 [#allocation3]
        %v1761 = vld [vmem:[%s1760] sm:$0xf]
        %v1762 = vld [vmem:[%s1760 + $0x4] sm:$0xf]
        %v1763 = vld [vmem:[%s1760 + $0x8] sm:$0xf]
        %v1764 = vld [vmem:[%s1760 + $0xc] sm:$0xf]
        %v1765 = vld [vmem:[%s1760 + $0x10] sm:$0xf]
        %v1766 = vld [vmem:[%s1760 + $0x14] sm:$0xf]
        %v1767 = vld [vmem:[%s1760 + $0x18] sm:$0xf]
        %v1768 = vld [vmem:[%s1760 + $0x1c] sm:$0xf]
        %v1769 = vld [vmem:[%s1760 + $0x20] sm:$0xf]
        %v1770 = vld [vmem:[%s1760 + $0x24] sm:$0xf]
        %v1771 = vld [vmem:[%s1760 + $0x28] sm:$0xf]
        %v1772 = vld [vmem:[%s1760 + $0x2c] sm:$0xf]
        %v1773 = vld [vmem:[%s1760 + $0x30] sm:$0xf]
        %v1774 = vld [vmem:[%s1760 + $0x34] sm:$0xf]
        %v1775 = vld [vmem:[%s1760 + $0x38] sm:$0xf]
        %v1776 = vld [vmem:[%s1760 + $0x3c] sm:$0xf]
        %v1777 = vrot.slane %v608, 5
        %v1795 = vunpack.c.l.b16 %v1761
        %v1796 = vunpack.c.l.b16 %v1762
        %v1797 = vunpack.c.l.b16 %v1763
        %v1798 = vunpack.c.l.b16 %v1764
        %v1799 = vunpack.c.l.b16 %v1765
        %v1800 = vunpack.c.l.b16 %v1766
        %v1801 = vunpack.c.l.b16 %v1767
        %v1802 = vunpack.c.l.b16 %v1768
        %v1803 = vunpack.c.l.b16 %v1769
        %v1804 = vunpack.c.l.b16 %v1770
        %v1805 = vunpack.c.l.b16 %v1771
        %v1806 = vunpack.c.l.b16 %v1772
        %v1807 = vunpack.c.l.b16 %v1773
        %v1808 = vunpack.c.l.b16 %v1774
        %v1809 = vunpack.c.l.b16 %v1775
        %v1810 = vunpack.c.l.b16 %v1776
        %v1811 = vpack.c.b16 %v1796, %v1795
        %v1812 = vpack.c.b16 %v1798, %v1797
        %v1813 = vpack.c.b16 %v1800, %v1799
        %v1814 = vpack.c.b16 %v1802, %v1801
        %v1815 = vpack.c.b16 %v1804, %v1803
        %v1816 = vpack.c.b16 %v1806, %v1805
        %v1817 = vpack.c.b16 %v1808, %v1807
        %v1818 = vpack.c.b16 %v1810, %v1809
        %1827 = vmatprep.subr.bf16.mxu0 0
        %1828 = vmatpush1.bf16.msra.mxu0 %v1818
        %1829 = vmatprep.subr.bf16.mxu0 0
        %1830 = vmatpush1.bf16.msra.mxu0 %v1817
        %1831 = vmatprep.subr.bf16.mxu0 0
        %1832 = vmatpush1.bf16.msra.mxu0 %v1816
        %1833 = vmatprep.subr.bf16.mxu0 0
        %1834 = vmatpush1.bf16.msra.mxu0 %v1815
        %1835 = vmatprep.subr.bf16.mxu0 0
        %1836 = vmatpush1.bf16.msra.mxu0 %v1814
        %1837 = vmatprep.subr.bf16.mxu0 0
        %1838 = vmatpush1.bf16.msra.mxu0 %v1813
        %1839 = vmatprep.subr.bf16.mxu0 0
        %1840 = vmatpush1.bf16.msra.mxu0 %v1812
        %1841 = vmatprep.subr.bf16.mxu0 0
        %1842 = vmatpush1.bf16.msra.mxu0 %v1811
        %1843 = vmatprep.subr.bf16.mxu0 0
        %1844 = vmatpush2.bf16.msra.mxu0 0
        %1845 = vmatprep.subr.bf16.mxu0 0
        %1846 = vmatpush2.bf16.msra.mxu0 0
        %1847 = vmatprep.subr.bf16.mxu0 0
        %1848 = vmatpush2.bf16.msra.mxu0 0
        %1849 = vmatprep.subr.bf16.mxu0 0
        %1850 = vmatpush2.bf16.msra.mxu0 0
        %1851 = vmatprep.subr.bf16.mxu0 0
        %1852 = vmatpush2.bf16.msra.mxu0 0
        %1853 = vmatprep.subr.bf16.mxu0 0
        %1854 = vmatpush2.bf16.msra.mxu0 0
        %1855 = vmatprep.subr.bf16.mxu0 0
        %1856 = vmatpush2.bf16.msra.mxu0 0
        %1857 = vmatprep.subr.bf16.mxu0 0
        %1858 = vmatpush2.bf16.msra.mxu0 0
        %1859 = vmatprep.mubr.bf16.mxu0 0
        %1860 = vmatmul.mubr.bf16.gmra.mxu0 %v1777
        %v1861 = vpop.f32.mrf.mxu0
        %v1862 = vadd.f32 0.0, %v1861
        %v1863 = vpop.f32.mrf.mxu0
        %v1864 = vpop.f32.mrf.mxu0
        %v1865 = vpop.f32.mrf.mxu0
        %1866 = vdwg.mxu0
        %v1867 = vadd.f32 %v1759, %v1862
        %s1868 = scalar_lea.vmem %s368, 768 [#allocation3]
        %v1869 = vld [vmem:[%s1868] sm:$0xf]
        %v1870 = vld [vmem:[%s1868 + $0x4] sm:$0xf]
        %v1871 = vld [vmem:[%s1868 + $0x8] sm:$0xf]
        %v1872 = vld [vmem:[%s1868 + $0xc] sm:$0xf]
        %v1873 = vld [vmem:[%s1868 + $0x10] sm:$0xf]
        %v1874 = vld [vmem:[%s1868 + $0x14] sm:$0xf]
        %v1875 = vld [vmem:[%s1868 + $0x18] sm:$0xf]
        %v1876 = vld [vmem:[%s1868 + $0x1c] sm:$0xf]
        %v1877 = vld [vmem:[%s1868 + $0x20] sm:$0xf]
        %v1878 = vld [vmem:[%s1868 + $0x24] sm:$0xf]
        %v1879 = vld [vmem:[%s1868 + $0x28] sm:$0xf]
        %v1880 = vld [vmem:[%s1868 + $0x2c] sm:$0xf]
        %v1881 = vld [vmem:[%s1868 + $0x30] sm:$0xf]
        %v1882 = vld [vmem:[%s1868 + $0x34] sm:$0xf]
        %v1883 = vld [vmem:[%s1868 + $0x38] sm:$0xf]
        %v1884 = vld [vmem:[%s1868 + $0x3c] sm:$0xf]
        %v1885 = vrot.slane %v573, 6
        %v1903 = vunpack.c.l.b16 %v1869
        %v1904 = vunpack.c.l.b16 %v1870
        %v1905 = vunpack.c.l.b16 %v1871
        %v1906 = vunpack.c.l.b16 %v1872
        %v1907 = vunpack.c.l.b16 %v1873
        %v1908 = vunpack.c.l.b16 %v1874
        %v1909 = vunpack.c.l.b16 %v1875
        %v1910 = vunpack.c.l.b16 %v1876
        %v1911 = vunpack.c.l.b16 %v1877
        %v1912 = vunpack.c.l.b16 %v1878
        %v1913 = vunpack.c.l.b16 %v1879
        %v1914 = vunpack.c.l.b16 %v1880
        %v1915 = vunpack.c.l.b16 %v1881
        %v1916 = vunpack.c.l.b16 %v1882
        %v1917 = vunpack.c.l.b16 %v1883
        %v1918 = vunpack.c.l.b16 %v1884
        %v1919 = vpack.c.b16 %v1904, %v1903
        %v1920 = vpack.c.b16 %v1906, %v1905
        %v1921 = vpack.c.b16 %v1908, %v1907
        %v1922 = vpack.c.b16 %v1910, %v1909
        %v1923 = vpack.c.b16 %v1912, %v1911
        %v1924 = vpack.c.b16 %v1914, %v1913
        %v1925 = vpack.c.b16 %v1916, %v1915
        %v1926 = vpack.c.b16 %v1918, %v1917
        %1935 = vmatprep.subr.bf16.mxu0 0
        %1936 = vmatpush1.bf16.msra.mxu0 %v1926
        %1937 = vmatprep.subr.bf16.mxu0 0
        %1938 = vmatpush1.bf16.msra.mxu0 %v1925
        %1939 = vmatprep.subr.bf16.mxu0 0
        %1940 = vmatpush1.bf16.msra.mxu0 %v1924
        %1941 = vmatprep.subr.bf16.mxu0 0
        %1942 = vmatpush1.bf16.msra.mxu0 %v1923
        %1943 = vmatprep.subr.bf16.mxu0 0
        %1944 = vmatpush1.bf16.msra.mxu0 %v1922
        %1945 = vmatprep.subr.bf16.mxu0 0
        %1946 = vmatpush1.bf16.msra.mxu0 %v1921
        %1947 = vmatprep.subr.bf16.mxu0 0
        %1948 = vmatpush1.bf16.msra.mxu0 %v1920
        %1949 = vmatprep.subr.bf16.mxu0 0
        %1950 = vmatpush1.bf16.msra.mxu0 %v1919
        %1951 = vmatprep.subr.bf16.mxu0 0
        %1952 = vmatpush2.bf16.msra.mxu0 0
        %1953 = vmatprep.subr.bf16.mxu0 0
        %1954 = vmatpush2.bf16.msra.mxu0 0
        %1955 = vmatprep.subr.bf16.mxu0 0
        %1956 = vmatpush2.bf16.msra.mxu0 0
        %1957 = vmatprep.subr.bf16.mxu0 0
        %1958 = vmatpush2.bf16.msra.mxu0 0
        %1959 = vmatprep.subr.bf16.mxu0 0
        %1960 = vmatpush2.bf16.msra.mxu0 0
        %1961 = vmatprep.subr.bf16.mxu0 0
        %1962 = vmatpush2.bf16.msra.mxu0 0
        %1963 = vmatprep.subr.bf16.mxu0 0
        %1964 = vmatpush2.bf16.msra.mxu0 0
        %1965 = vmatprep.subr.bf16.mxu0 0
        %1966 = vmatpush2.bf16.msra.mxu0 0
        %1967 = vmatprep.mubr.bf16.mxu0 0
        %1968 = vmatmul.mubr.bf16.gmra.mxu0 %v1885
        %v1969 = vpop.f32.mrf.mxu0
        %v1970 = vadd.f32 0.0, %v1969
        %v1971 = vpop.f32.mrf.mxu0
        %v1972 = vpop.f32.mrf.mxu0
        %v1973 = vpop.f32.mrf.mxu0
        %1974 = vdwg.mxu0
        %v1975 = vadd.f32 %v1867, %v1970
        %s1976 = scalar_lea.vmem %s368, 832 [#allocation3]
        %v1977 = vld [vmem:[%s1976] sm:$0xf]
        %v1978 = vld [vmem:[%s1976 + $0x4] sm:$0xf]
        %v1979 = vld [vmem:[%s1976 + $0x8] sm:$0xf]
        %v1980 = vld [vmem:[%s1976 + $0xc] sm:$0xf]
        %v1981 = vld [vmem:[%s1976 + $0x10] sm:$0xf]
        %v1982 = vld [vmem:[%s1976 + $0x14] sm:$0xf]
        %v1983 = vld [vmem:[%s1976 + $0x18] sm:$0xf]
        %v1984 = vld [vmem:[%s1976 + $0x1c] sm:$0xf]
        %v1985 = vld [vmem:[%s1976 + $0x20] sm:$0xf]
        %v1986 = vld [vmem:[%s1976 + $0x24] sm:$0xf]
        %v1987 = vld [vmem:[%s1976 + $0x28] sm:$0xf]
        %v1988 = vld [vmem:[%s1976 + $0x2c] sm:$0xf]
        %v1989 = vld [vmem:[%s1976 + $0x30] sm:$0xf]
        %v1990 = vld [vmem:[%s1976 + $0x34] sm:$0xf]
        %v1991 = vld [vmem:[%s1976 + $0x38] sm:$0xf]
        %v1992 = vld [vmem:[%s1976 + $0x3c] sm:$0xf]
        %v1993 = vrot.slane %v608, 6
        %v2011 = vunpack.c.l.b16 %v1977
        %v2012 = vunpack.c.l.b16 %v1978
        %v2013 = vunpack.c.l.b16 %v1979
        %v2014 = vunpack.c.l.b16 %v1980
        %v2015 = vunpack.c.l.b16 %v1981
        %v2016 = vunpack.c.l.b16 %v1982
        %v2017 = vunpack.c.l.b16 %v1983
        %v2018 = vunpack.c.l.b16 %v1984
        %v2019 = vunpack.c.l.b16 %v1985
        %v2020 = vunpack.c.l.b16 %v1986
        %v2021 = vunpack.c.l.b16 %v1987
        %v2022 = vunpack.c.l.b16 %v1988
        %v2023 = vunpack.c.l.b16 %v1989
        %v2024 = vunpack.c.l.b16 %v1990
        %v2025 = vunpack.c.l.b16 %v1991
        %v2026 = vunpack.c.l.b16 %v1992
        %v2027 = vpack.c.b16 %v2012, %v2011
        %v2028 = vpack.c.b16 %v2014, %v2013
        %v2029 = vpack.c.b16 %v2016, %v2015
        %v2030 = vpack.c.b16 %v2018, %v2017
        %v2031 = vpack.c.b16 %v2020, %v2019
        %v2032 = vpack.c.b16 %v2022, %v2021
        %v2033 = vpack.c.b16 %v2024, %v2023
        %v2034 = vpack.c.b16 %v2026, %v2025
        %2043 = vmatprep.subr.bf16.mxu0 0
        %2044 = vmatpush1.bf16.msra.mxu0 %v2034
        %2045 = vmatprep.subr.bf16.mxu0 0
        %2046 = vmatpush1.bf16.msra.mxu0 %v2033
        %2047 = vmatprep.subr.bf16.mxu0 0
        %2048 = vmatpush1.bf16.msra.mxu0 %v2032
        %2049 = vmatprep.subr.bf16.mxu0 0
        %2050 = vmatpush1.bf16.msra.mxu0 %v2031
        %2051 = vmatprep.subr.bf16.mxu0 0
        %2052 = vmatpush1.bf16.msra.mxu0 %v2030
        %2053 = vmatprep.subr.bf16.mxu0 0
        %2054 = vmatpush1.bf16.msra.mxu0 %v2029
        %2055 = vmatprep.subr.bf16.mxu0 0
        %2056 = vmatpush1.bf16.msra.mxu0 %v2028
        %2057 = vmatprep.subr.bf16.mxu0 0
        %2058 = vmatpush1.bf16.msra.mxu0 %v2027
        %2059 = vmatprep.subr.bf16.mxu0 0
        %2060 = vmatpush2.bf16.msra.mxu0 0
        %2061 = vmatprep.subr.bf16.mxu0 0
        %2062 = vmatpush2.bf16.msra.mxu0 0
        %2063 = vmatprep.subr.bf16.mxu0 0
        %2064 = vmatpush2.bf16.msra.mxu0 0
        %2065 = vmatprep.subr.bf16.mxu0 0
        %2066 = vmatpush2.bf16.msra.mxu0 0
        %2067 = vmatprep.subr.bf16.mxu0 0
        %2068 = vmatpush2.bf16.msra.mxu0 0
        %2069 = vmatprep.subr.bf16.mxu0 0
        %2070 = vmatpush2.bf16.msra.mxu0 0
        %2071 = vmatprep.subr.bf16.mxu0 0
        %2072 = vmatpush2.bf16.msra.mxu0 0
        %2073 = vmatprep.subr.bf16.mxu0 0
        %2074 = vmatpush2.bf16.msra.mxu0 0
        %2075 = vmatprep.mubr.bf16.mxu0 0
        %2076 = vmatmul.mubr.bf16.gmra.mxu0 %v1993
        %v2077 = vpop.f32.mrf.mxu0
        %v2078 = vadd.f32 0.0, %v2077
        %v2079 = vpop.f32.mrf.mxu0
        %v2080 = vpop.f32.mrf.mxu0
        %v2081 = vpop.f32.mrf.mxu0
        %2082 = vdwg.mxu0
        %v2083 = vadd.f32 %v1975, %v2078
        %s2084 = scalar_lea.vmem %s368, 896 [#allocation3]
        %v2085 = vld [vmem:[%s2084] sm:$0xf]
        %v2086 = vld [vmem:[%s2084 + $0x4] sm:$0xf]
        %v2087 = vld [vmem:[%s2084 + $0x8] sm:$0xf]
        %v2088 = vld [vmem:[%s2084 + $0xc] sm:$0xf]
        %v2089 = vld [vmem:[%s2084 + $0x10] sm:$0xf]
        %v2090 = vld [vmem:[%s2084 + $0x14] sm:$0xf]
        %v2091 = vld [vmem:[%s2084 + $0x18] sm:$0xf]
        %v2092 = vld [vmem:[%s2084 + $0x1c] sm:$0xf]
        %v2093 = vld [vmem:[%s2084 + $0x20] sm:$0xf]
        %v2094 = vld [vmem:[%s2084 + $0x24] sm:$0xf]
        %v2095 = vld [vmem:[%s2084 + $0x28] sm:$0xf]
        %v2096 = vld [vmem:[%s2084 + $0x2c] sm:$0xf]
        %v2097 = vld [vmem:[%s2084 + $0x30] sm:$0xf]
        %v2098 = vld [vmem:[%s2084 + $0x34] sm:$0xf]
        %v2099 = vld [vmem:[%s2084 + $0x38] sm:$0xf]
        %v2100 = vld [vmem:[%s2084 + $0x3c] sm:$0xf]
        %v2101 = vrot.slane %v573, 7
        %v2119 = vunpack.c.l.b16 %v2085
        %v2120 = vunpack.c.l.b16 %v2086
        %v2121 = vunpack.c.l.b16 %v2087
        %v2122 = vunpack.c.l.b16 %v2088
        %v2123 = vunpack.c.l.b16 %v2089
        %v2124 = vunpack.c.l.b16 %v2090
        %v2125 = vunpack.c.l.b16 %v2091
        %v2126 = vunpack.c.l.b16 %v2092
        %v2127 = vunpack.c.l.b16 %v2093
        %v2128 = vunpack.c.l.b16 %v2094
        %v2129 = vunpack.c.l.b16 %v2095
        %v2130 = vunpack.c.l.b16 %v2096
        %v2131 = vunpack.c.l.b16 %v2097
        %v2132 = vunpack.c.l.b16 %v2098
        %v2133 = vunpack.c.l.b16 %v2099
        %v2134 = vunpack.c.l.b16 %v2100
        %v2135 = vpack.c.b16 %v2120, %v2119
        %v2136 = vpack.c.b16 %v2122, %v2121
        %v2137 = vpack.c.b16 %v2124, %v2123
        %v2138 = vpack.c.b16 %v2126, %v2125
        %v2139 = vpack.c.b16 %v2128, %v2127
        %v2140 = vpack.c.b16 %v2130, %v2129
        %v2141 = vpack.c.b16 %v2132, %v2131
        %v2142 = vpack.c.b16 %v2134, %v2133
        %2151 = vmatprep.subr.bf16.mxu0 0
        %2152 = vmatpush1.bf16.msra.mxu0 %v2142
        %2153 = vmatprep.subr.bf16.mxu0 0
        %2154 = vmatpush1.bf16.msra.mxu0 %v2141
        %2155 = vmatprep.subr.bf16.mxu0 0
        %2156 = vmatpush1.bf16.msra.mxu0 %v2140
        %2157 = vmatprep.subr.bf16.mxu0 0
        %2158 = vmatpush1.bf16.msra.mxu0 %v2139
        %2159 = vmatprep.subr.bf16.mxu0 0
        %2160 = vmatpush1.bf16.msra.mxu0 %v2138
        %2161 = vmatprep.subr.bf16.mxu0 0
        %2162 = vmatpush1.bf16.msra.mxu0 %v2137
        %2163 = vmatprep.subr.bf16.mxu0 0
        %2164 = vmatpush1.bf16.msra.mxu0 %v2136
        %2165 = vmatprep.subr.bf16.mxu0 0
        %2166 = vmatpush1.bf16.msra.mxu0 %v2135
        %2167 = vmatprep.subr.bf16.mxu0 0
        %2168 = vmatpush2.bf16.msra.mxu0 0
        %2169 = vmatprep.subr.bf16.mxu0 0
        %2170 = vmatpush2.bf16.msra.mxu0 0
        %2171 = vmatprep.subr.bf16.mxu0 0
        %2172 = vmatpush2.bf16.msra.mxu0 0
        %2173 = vmatprep.subr.bf16.mxu0 0
        %2174 = vmatpush2.bf16.msra.mxu0 0
        %2175 = vmatprep.subr.bf16.mxu0 0
        %2176 = vmatpush2.bf16.msra.mxu0 0
        %2177 = vmatprep.subr.bf16.mxu0 0
        %2178 = vmatpush2.bf16.msra.mxu0 0
        %2179 = vmatprep.subr.bf16.mxu0 0
        %2180 = vmatpush2.bf16.msra.mxu0 0
        %2181 = vmatprep.subr.bf16.mxu0 0
        %2182 = vmatpush2.bf16.msra.mxu0 0
        %2183 = vmatprep.mubr.bf16.mxu0 0
        %2184 = vmatmul.mubr.bf16.gmra.mxu0 %v2101
        %v2185 = vpop.f32.mrf.mxu0
        %v2186 = vadd.f32 0.0, %v2185
        %v2187 = vpop.f32.mrf.mxu0
        %v2188 = vpop.f32.mrf.mxu0
        %v2189 = vpop.f32.mrf.mxu0
        %2190 = vdwg.mxu0
        %v2191 = vadd.f32 %v2083, %v2186
        %s2192 = scalar_lea.vmem %s368, 960 [#allocation3]
        %v2193 = vld [vmem:[%s2192] sm:$0xf]
        %v2194 = vld [vmem:[%s2192 + $0x4] sm:$0xf]
        %v2195 = vld [vmem:[%s2192 + $0x8] sm:$0xf]
        %v2196 = vld [vmem:[%s2192 + $0xc] sm:$0xf]
        %v2197 = vld [vmem:[%s2192 + $0x10] sm:$0xf]
        %v2198 = vld [vmem:[%s2192 + $0x14] sm:$0xf]
        %v2199 = vld [vmem:[%s2192 + $0x18] sm:$0xf]
        %v2200 = vld [vmem:[%s2192 + $0x1c] sm:$0xf]
        %v2201 = vld [vmem:[%s2192 + $0x20] sm:$0xf]
        %v2202 = vld [vmem:[%s2192 + $0x24] sm:$0xf]
        %v2203 = vld [vmem:[%s2192 + $0x28] sm:$0xf]
        %v2204 = vld [vmem:[%s2192 + $0x2c] sm:$0xf]
        %v2205 = vld [vmem:[%s2192 + $0x30] sm:$0xf]
        %v2206 = vld [vmem:[%s2192 + $0x34] sm:$0xf]
        %v2207 = vld [vmem:[%s2192 + $0x38] sm:$0xf]
        %v2208 = vld [vmem:[%s2192 + $0x3c] sm:$0xf]
        %v2209 = vrot.slane %v608, 7
        %v2227 = vunpack.c.l.b16 %v2193
        %v2228 = vunpack.c.l.b16 %v2194
        %v2229 = vunpack.c.l.b16 %v2195
        %v2230 = vunpack.c.l.b16 %v2196
        %v2231 = vunpack.c.l.b16 %v2197
        %v2232 = vunpack.c.l.b16 %v2198
        %v2233 = vunpack.c.l.b16 %v2199
        %v2234 = vunpack.c.l.b16 %v2200
        %v2235 = vunpack.c.l.b16 %v2201
        %v2236 = vunpack.c.l.b16 %v2202
        %v2237 = vunpack.c.l.b16 %v2203
        %v2238 = vunpack.c.l.b16 %v2204
        %v2239 = vunpack.c.l.b16 %v2205
        %v2240 = vunpack.c.l.b16 %v2206
        %v2241 = vunpack.c.l.b16 %v2207
        %v2242 = vunpack.c.l.b16 %v2208
        %v2243 = vpack.c.b16 %v2228, %v2227
        %v2244 = vpack.c.b16 %v2230, %v2229
        %v2245 = vpack.c.b16 %v2232, %v2231
        %v2246 = vpack.c.b16 %v2234, %v2233
        %v2247 = vpack.c.b16 %v2236, %v2235
        %v2248 = vpack.c.b16 %v2238, %v2237
        %v2249 = vpack.c.b16 %v2240, %v2239
        %v2250 = vpack.c.b16 %v2242, %v2241
        %2259 = vmatprep.subr.bf16.mxu0 0
        %2260 = vmatpush1.bf16.msra.mxu0 %v2250
        %2261 = vmatprep.subr.bf16.mxu0 0
        %2262 = vmatpush1.bf16.msra.mxu0 %v2249
        %2263 = vmatprep.subr.bf16.mxu0 0
        %2264 = vmatpush1.bf16.msra.mxu0 %v2248
        %2265 = vmatprep.subr.bf16.mxu0 0
        %2266 = vmatpush1.bf16.msra.mxu0 %v2247
        %2267 = vmatprep.subr.bf16.mxu0 0
        %2268 = vmatpush1.bf16.msra.mxu0 %v2246
        %2269 = vmatprep.subr.bf16.mxu0 0
        %2270 = vmatpush1.bf16.msra.mxu0 %v2245
        %2271 = vmatprep.subr.bf16.mxu0 0
        %2272 = vmatpush1.bf16.msra.mxu0 %v2244
        %2273 = vmatprep.subr.bf16.mxu0 0
        %2274 = vmatpush1.bf16.msra.mxu0 %v2243
        %2275 = vmatprep.subr.bf16.mxu0 0
        %2276 = vmatpush2.bf16.msra.mxu0 0
        %2277 = vmatprep.subr.bf16.mxu0 0
        %2278 = vmatpush2.bf16.msra.mxu0 0
        %2279 = vmatprep.subr.bf16.mxu0 0
        %2280 = vmatpush2.bf16.msra.mxu0 0
        %2281 = vmatprep.subr.bf16.mxu0 0
        %2282 = vmatpush2.bf16.msra.mxu0 0
        %2283 = vmatprep.subr.bf16.mxu0 0
        %2284 = vmatpush2.bf16.msra.mxu0 0
        %2285 = vmatprep.subr.bf16.mxu0 0
        %2286 = vmatpush2.bf16.msra.mxu0 0
        %2287 = vmatprep.subr.bf16.mxu0 0
        %2288 = vmatpush2.bf16.msra.mxu0 0
        %2289 = vmatprep.subr.bf16.mxu0 0
        %2290 = vmatpush2.bf16.msra.mxu0 0
        %2291 = vmatprep.mubr.bf16.mxu0 0
        %2292 = vmatmul.mubr.bf16.gmra.mxu0 %v2209
        %v2293 = vpop.f32.mrf.mxu0
        %v2294 = vadd.f32 0.0, %v2293
        %v2295 = vpop.f32.mrf.mxu0
        %v2296 = vpop.f32.mrf.mxu0
        %v2297 = vpop.f32.mrf.mxu0
        %2298 = vdwg.mxu0
        %v2299 = vadd.f32 %v2191, %v2294
        %v2300 = vld [vmem:[#allocation2] sm:$0x1]
        %v2301 = vadd.f32 %v2300, %v2299
        %2302 = vst [vmem:[#allocation2] sm:$0x1] %v2301
        %p2303 = scmp.eq.s32.totalorder %s32, 2
        // Predicated region
        $region69: #{text_model_forward.1} parent=47 // pred_check
          %p2304 = pneg %p2303
        $region70: #{text_model_forward.1} parent=47 // pred_check_branch
          %2306 = sbr.rel (%p2304) target = $region72
        $region71: #{text_model_forward.1} parent=47 // pred_region
          %v2307 = vld [vmem:[#allocation2] sm:$0x1]
          %v2308 = vld [vmem:[%s376] sm:$0x1]
          %v2309 = vadd.f32 %v2307, %v2308
          %v2310 = vmax.f32 %v2309, 0.0
          %v2311 = vld [vmem:[%s385] sm:$0xff]
          %v2312 = vld [vmem:[%s385 + $0x8] sm:$0xff]
          %v2313 = vld [vmem:[%s385 + $0x10] sm:$0xff]
          %v2314 = vld [vmem:[%s385 + $0x18] sm:$0xff]
          %v2315 = vld [vmem:[%s385 + $0x20] sm:$0xff]
          %v2316 = vld [vmem:[%s385 + $0x28] sm:$0xff]
          %v2317 = vld [vmem:[%s385 + $0x30] sm:$0xff]
          %v2318 = vld [vmem:[%s385 + $0x38] sm:$0xff]
          %v2319 = vld [vmem:[%s385 + $0x40] sm:$0xff]
          %v2320 = vld [vmem:[%s385 + $0x48] sm:$0xff]
          %v2321 = vld [vmem:[%s385 + $0x50] sm:$0xff]
          %v2322 = vld [vmem:[%s385 + $0x58] sm:$0xff]
          %v2323 = vld [vmem:[%s385 + $0x60] sm:$0xff]
          %v2324 = vld [vmem:[%s385 + $0x68] sm:$0xff]
          %v2325 = vld [vmem:[%s385 + $0x70] sm:$0xff]
          %v2326 = vld [vmem:[%s385 + $0x78] sm:$0xff]
          %v2327 = vld [vmem:[%s393] sm:$0x1]
          %2328 = vmatprep.subr.mxu0 0.0
          %2329 = vmatpush1.msra.mxu0 %v2326
          %2330 = vmatprep.subr.mxu0 0.0
          %2331 = vmatpush1.msra.mxu0 %v2325
          %2332 = vmatprep.subr.mxu0 0.0
          %2333 = vmatpush1.msra.mxu0 %v2324
          %2334 = vmatprep.subr.mxu0 0.0
          %2335 = vmatpush1.msra.mxu0 %v2323
          %2336 = vmatprep.subr.mxu0 0.0
          %2337 = vmatpush1.msra.mxu0 %v2322
          %2338 = vmatprep.subr.mxu0 0.0
          %2339 = vmatpush1.msra.mxu0 %v2321
          %2340 = vmatprep.subr.mxu0 0.0
          %2341 = vmatpush1.msra.mxu0 %v2320
          %2342 = vmatprep.subr.mxu0 0.0
          %2343 = vmatpush1.msra.mxu0 %v2319
          %2344 = vmatprep.subr.mxu0 0.0
          %2345 = vmatpush1.msra.mxu0 %v2318
          %2346 = vmatprep.subr.mxu0 0.0
          %2347 = vmatpush1.msra.mxu0 %v2317
          %2348 = vmatprep.subr.mxu0 0.0
          %2349 = vmatpush1.msra.mxu0 %v2316
          %2350 = vmatprep.subr.mxu0 0.0
          %2351 = vmatpush1.msra.mxu0 %v2315
          %2352 = vmatprep.subr.mxu0 0.0
          %2353 = vmatpush1.msra.mxu0 %v2314
          %2354 = vmatprep.subr.mxu0 0.0
          %2355 = vmatpush1.msra.mxu0 %v2313
          %2356 = vmatprep.subr.mxu0 0.0
          %2357 = vmatpush1.msra.mxu0 %v2312
          %2358 = vmatprep.subr.mxu0 0.0
          %2359 = vmatpush1.msra.mxu0 %v2311
          %2360 = vmatprep.subr.mxu0 0.0
          %2361 = vmatpush2.msra.mxu0 0.0
          %2362 = vmatprep.subr.mxu0 0.0
          %2363 = vmatpush2.msra.mxu0 0.0
          %2364 = vmatprep.subr.mxu0 0.0
          %2365 = vmatpush2.msra.mxu0 0.0
          %2366 = vmatprep.subr.mxu0 0.0
          %2367 = vmatpush2.msra.mxu0 0.0
          %2368 = vmatprep.subr.mxu0 0.0
          %2369 = vmatpush2.msra.mxu0 0.0
          %2370 = vmatprep.subr.mxu0 0.0
          %2371 = vmatpush2.msra.mxu0 0.0
          %2372 = vmatprep.subr.mxu0 0.0
          %2373 = vmatpush2.msra.mxu0 0.0
          %2374 = vmatprep.subr.mxu0 0.0
          %2375 = vmatpush2.msra.mxu0 0.0
          %2376 = vmatprep.subr.mxu0 0.0
          %2377 = vmatpush2.msra.mxu0 0.0
          %2378 = vmatprep.subr.mxu0 0.0
          %2379 = vmatpush2.msra.mxu0 0.0
          %2380 = vmatprep.subr.mxu0 0.0
          %2381 = vmatpush2.msra.mxu0 0.0
          %2382 = vmatprep.subr.mxu0 0.0
          %2383 = vmatpush2.msra.mxu0 0.0
          %2384 = vmatprep.subr.mxu0 0.0
          %2385 = vmatpush2.msra.mxu0 0.0
          %2386 = vmatprep.subr.mxu0 0.0
          %2387 = vmatpush2.msra.mxu0 0.0
          %2388 = vmatprep.subr.mxu0 0.0
          %2389 = vmatpush2.msra.mxu0 0.0
          %2390 = vmatprep.subr.mxu0 0.0
          %2391 = vmatpush2.msra.mxu0 0.0
          %2392 = vmatprep.mubr.f32.mxu0 0.0
          %2393 = vmatmul.mubr.f32.gmra.mxu0 %v2310
          %v2394 = vpop.f32.mrf.mxu0
          %v2395 = vadd.f32 %v2327, %v2394
          %v2396 = vpop.f32.mrf.mxu0
          %2397 = vdwg.mxu0
          %2398 = vst [vmem:[%s461] sm:$0x1] %v2395
        $region72: #{text_model_forward.1} parent=47 // pred_fallthru
          _
        %p2399 = scmp.lt.s32.totalorder %s31, 1
        %s2400 = scalar_select %p2399, %s31, 1
        %s2401 = scalar_lea.vmem %s7, %s2400
        // Predicated region
        $region73: #{text_model_forward.1} parent=47 // pred_check
          %p2402 = pneg %p236
        $region74: #{text_model_forward.1} parent=47 // pred_check_branch
          %2404 = sbr.rel (%p2402) target = $region76
        $region75: #{text_model_forward.1} parent=47 // pred_region
          _
        $region76: #{text_model_forward.1} parent=47 // pred_fallthru
          _
      $region48: #{text_model_forward.1} parent=5 // pred_fallthru
        _
      %p2405 = scmp.le.s32.totalorder 2, %s22
      // Predicated region
      $region77: #{text_model_forward.1} parent=5 // pred_check
        %p2406 = pneg %p2405
      $region78: #{text_model_forward.1} parent=5 // pred_check_branch
        %2408 = sbr.rel (%p2406) target = $region80
      $region79: #{text_model_forward.1} parent=5 // pred_region
        %s2409 = ssub.s32 %s22, 2
        // Predicated region
        $region81: #{text_model_forward.1} parent=79 // pred_check
          %p2410 = pneg %p242
        $region82: #{text_model_forward.1} parent=79 // pred_check_branch
          %2412 = sbr.rel (%p2410) target = $region84
        $region83: #{text_model_forward.1} parent=79 // pred_region
          %p2413 = scmp.lt.s32.totalorder %s33, 1
          %s2414 = scalar_select %p2413, %s33, 1
          %s2415 = scalar_lea.vmem %s7, %s2414
        $region84: #{text_model_forward.1} parent=79 // pred_fallthru
          _
      $region80: #{text_model_forward.1} parent=5 // pred_fallthru
        _
    $region6: #{text_model_forward.1} parent=1 // loop_footer
      %s26 = sadd.s32 1, %s22
    $region7: #{text_model_forward.1} parent=1 // loop_footer_branch
      %21 = sbr.rel target = $region3
    $region8: #{text_model_forward.1} parent=1 // loop_exit
      _
    %2416 = vsyncpa [#allocation4], 1
    %s2417 = scalar_lea.sflag [#allocation4], 1
    %2418 = vsyncpa %s2417, 1
    %2419 = vsyncpa [#allocation6], 1
    %s2420 = scalar_lea.sflag [#allocation6], 1
    %2421 = vsyncpa %s2420, 1
    %2422 = vsyncpa [#allocation9], 1
    %s2423 = scalar_lea.sflag [#allocation9], 1
    %2424 = vsyncpa %s2423, 1

</llo_original>
